<compile_context>
chip_gen: v5e
topology: v5e:2x2
jax: 0.10.0
libtpu: 0.0.40
codegen_flags: <defaults>
</compile_context>

<pallas_src>
import math
import functools

import jax
import jax.numpy as jnp
from jax.experimental import pallas as pl
from jax.experimental.pallas import tpu as pltpu


def _bttn_kernel(qpb_ref, kpt_ref, mup_ref, eps_ref, v_ref, ln_ref, sp_ref,
                 out_ref, kl_ref, m_scr, l_scr, acc_scr, kl_scr,
                 *, dim, sigma, temp):
    """One (query tile, key tile) step of the fused BTTN forward."""
    kj = pl.program_id(1)
    nk_steps = pl.num_programs(1)

    @pl.when(kj == 0)
    def _init():
        m_scr[...] = jnp.full_like(m_scr, -jnp.inf)
        l_scr[...] = jnp.zeros_like(l_scr)
        acc_scr[...] = jnp.zeros_like(acc_scr)
        kl_scr[...] = jnp.zeros_like(kl_scr)

    qpb = qpb_ref[...]                  # [TQ, D]   Q @ Wp_q + bp   (hoisted)
    kpt = kpt_ref[...]                  # [D, NKT]  (K @ Wp_k).T    (hoisted)
    cdtype = qpb.dtype                  # f32 or bf16 elementwise path
    tq_blk = qpb.shape[0]
    nkt_blk = kpt.shape[1]

    # ---- posterior head: NKT on lanes, reduce over D with scalar weights ----
    # phi[q,k]    = sum_d relu(qpb[q,d] + kpart[k,d]) * w_mu[d]  (+ b_mu later)
    # logvar[q,k] = sum_d relu(qpb[q,d] + kpart[k,d]) * w_lv[d]  (+ b_lv later)
    zero = jnp.zeros((), cdtype)
    phi = jnp.zeros((tq_blk, nkt_blk), cdtype)
    logvar = jnp.zeros((tq_blk, nkt_blk), cdtype)
    for d in range(dim):                       # unrolled, D is small & static
        # [TQ,1] lane-broadcast  +  [1,NKT] sublane-broadcast  ->  [TQ,NKT]
        lat = jnp.maximum(qpb[:, d:d + 1] + kpt[d:d + 1, :], zero)
        w_mu_d = sp_ref[d].astype(cdtype)          # SMEM scalars
        w_lv_d = sp_ref[dim + d].astype(cdtype)
        phi = phi + lat * w_mu_d
        logvar = logvar + lat * w_lv_d

    # downstream per-(q,k) math (exp / KL / sampling) stays in f32
    phi = phi.astype(jnp.float32) + sp_ref[2 * dim]          # + b_mu
    logvar = logvar.astype(jnp.float32) + sp_ref[2 * dim + 1]  # + b_lv
    sigma_post = jnp.exp(0.5 * logvar)
    var_post = sigma_post * sigma_post
    mu_post = phi - 0.5 * var_post

    # KL(posterior || prior): partial sum over this key tile, per query row.
    mu_prior = mup_ref[...]                                   # [1, NKT] f32
    term0 = math.log(sigma) - 0.5 * logvar       # log(sigma_prior / sigma_post)
    term1 = (var_post + (mu_post - mu_prior) ** 2) * (0.5 / (sigma * sigma))
    kl_scr[...] += jnp.sum(term0 + term1 - 0.5, axis=-1, keepdims=True)

    # reparameterized samples + online (flash-style) softmax over keys
    eps = eps_ref[...]                                        # [TQ, NKT] f32
    samples = jnp.exp(mu_post + sigma_post * eps) * (1.0 / temp)
    m_prev = m_scr[...]
    m_new = jnp.maximum(m_prev, jnp.max(samples, axis=-1, keepdims=True))
    corr = jnp.exp(m_prev - m_new)
    p = jnp.exp(samples - m_new)
    l_scr[...] = corr * l_scr[...] + jnp.sum(p, axis=-1, keepdims=True)
    acc_scr[...] = corr * acc_scr[...] + jnp.dot(
        p.astype(v_ref.dtype), v_ref[...], preferred_element_type=jnp.float32)
    m_scr[...] = m_new

    @pl.when(kj == nk_steps - 1)
    def _finalize():
        gamma = ln_ref[0:1, :]
        beta = ln_ref[1:2, :]
        # approx reciprocal: the per-row scale error cancels in LayerNorm.
        ctx = acc_scr[...] * pl.reciprocal(l_scr[...], approx=True)   # [TQ, D]
        mean = jnp.mean(ctx, axis=-1, keepdims=True)
        diff = ctx - mean
        var = jnp.mean(diff * diff, axis=-1, keepdims=True)
        out_ref[...] = (diff * jax.lax.rsqrt(var + 1e-5)) * gamma + beta
        kl_ref[...] = kl_scr[...]


def _tpu_generation():
    """Best-effort TPU generation sniff ('' if unknown / not TPU)."""
    try:
        d = jax.devices()[0]
        if d.platform != "tpu":
            return ""
        return d.device_kind.lower()
    except Exception:
        return ""


def bttn_forward(Q, K, V, eps, params, *, sigma=0.5, temp=1.0,
                 tq=None, nkt=None, compute_dtype=None):
    NQ, D = Q.shape
    NK = K.shape[0]

    kind = _tpu_generation()
    is_v7 = "v7" in kind
    if compute_dtype is None:
        # bf16 VPU/EUP exist on v6e/v7x; v5e (and unknown chips) stay f32.
        compute_dtype = jnp.bfloat16 if ("v6" in kind or is_v7) else jnp.float32
    vmem_limit = (40 if is_v7 else 48) * 1024 * 1024

    # ---- tile sizes ---------------------------------------------------------
    if tq is None:
        tq = min(NQ, 128)
    if nkt is None:
        nkt = min(NK, 128 if is_v7 else 256)
    # working set per step is a handful of [tq, nkt] f32 slabs
    budget = (3 if is_v7 else 6) * 2**20
    while nkt > 128 and NK % (nkt // 2) == 0 and tq * nkt * 4 * 8 > budget:
        nkt //= 2
    while tq > 8 and NQ % (tq // 2) == 0 and tq * nkt * 4 * 8 > budget:
        tq //= 2
    if is_v7 and NQ // tq < 2 and tq >= 16 and NQ % (tq // 2) == 0:
        tq //= 2        # >= 2 query tiles so both v7x TensorCores get work
    assert NQ % tq == 0 and (tq == NQ or tq % 8 == 0), (NQ, tq)
    assert NK % nkt == 0 and (nkt == NK or nkt % 128 == 0), (NK, nkt)

    sigma_prior = float(sigma)

    # ---- K-only / Q-only work hoisted out of the grid (runs once via XLA) ---
    h = jax.nn.relu(K @ params["W1"] + params["b1"])                      # [NK, D]
    mu_prior = (h @ params["w2"] + params["b2"]
                - 0.5 * sigma_prior ** 2).reshape(1, NK)                  # [1, NK]
    kpart_t = (K @ params["Wp"][D:, :]).T.astype(compute_dtype)           # [D, NK]
    qpb = (Q @ params["Wp"][:D, :] + params["bp"]).astype(compute_dtype)  # [NQ, D]

    # scalar params in SMEM: [w_mu (D), w_lv (D), b_mu, b_lv]
    sparams = jnp.concatenate([
        params["w_mu"].astype(jnp.float32),
        params["w_lv"].astype(jnp.float32),
        jnp.array([params["b_mu"], params["b_lv"]], jnp.float32)])        # [2D+2]
    lnp = jnp.stack([params["gamma"], params["beta"]], axis=0)            # [2, D]

    v_lo = V.astype(jnp.bfloat16)       # MXU is bf16-native; accumulate in f32

    kernel = functools.partial(_bttn_kernel, dim=D, sigma=sigma_prior,
                               temp=float(temp))

    out, kl_part = pl.pallas_call(
        kernel,
        out_shape=(jax.ShapeDtypeStruct((NQ, D), jnp.float32),
                   jax.ShapeDtypeStruct((NQ, 1), jnp.float32)),
        grid=(NQ // tq, NK // nkt),
        in_specs=[
            pl.BlockSpec((tq, D), lambda i, j: (i, 0)),        # qpb  (Q @ Wp_q + bp)
            pl.BlockSpec((D, nkt), lambda i, j: (0, j)),       # kpart_t ((K @ Wp_k).T)
            pl.BlockSpec((1, nkt), lambda i, j: (0, j)),       # mu_prior
            pl.BlockSpec((tq, nkt), lambda i, j: (i, j)),      # eps
            pl.BlockSpec((nkt, D), lambda i, j: (j, 0)),       # V (bf16)
            pl.BlockSpec((2, D), lambda i, j: (0, 0)),         # gamma / beta
            pl.BlockSpec(memory_space=pltpu.MemorySpace.SMEM), # scalar params
        ],
        out_specs=[
            pl.BlockSpec((tq, D), lambda i, j: (i, 0)),
            pl.BlockSpec((tq, 1), lambda i, j: (i, 0)),
        ],
        scratch_shapes=[
            pltpu.VMEM((tq, 1), jnp.float32),   # running max
            pltpu.VMEM((tq, 1), jnp.float32),   # running softmax denominator
            pltpu.VMEM((tq, D), jnp.float32),   # context accumulator
            pltpu.VMEM((tq, 1), jnp.float32),   # KL accumulator
        ],
        compiler_params=pltpu.CompilerParams(
            dimension_semantics=("parallel", "arbitrary"),
            vmem_limit_bytes=vmem_limit),
    )(qpb, kpart_t, mu_prior, eps, v_lo, lnp, sparams)

    kl = jnp.sum(kl_part) / (NQ * NK)   # mean over all (query, key) pairs
    return out, kl


def bttn_reference(Q, K, V, eps, p, *, sigma=0.5, temp=1.0):
    """Pure-JAX replica of the PyTorch module (shared-keys branch)."""
    NQ, D = Q.shape
    NK = K.shape[0]
    Qe = jnp.broadcast_to(Q[:, None, :], (NQ, NK, D))
    Ke = jnp.broadcast_to(K[None, :, :], (NQ, NK, D))
    sigma_prior = sigma
    h = jax.nn.relu(Ke @ p["W1"] + p["b1"])
    mu_prior = h @ p["w2"] + p["b2"] - 0.5 * sigma_prior ** 2
    latent = jax.nn.relu(jnp.concatenate([Qe, Ke], axis=-1) @ p["Wp"] + p["bp"])
    logvar = latent @ p["w_lv"] + p["b_lv"]
    phi = latent @ p["w_mu"] + p["b_mu"]
    sp = jnp.exp(0.5 * logvar)
    mu = phi - 0.5 * sp ** 2
    kl = jnp.mean(jnp.log(sigma_prior / sp)
                  + (sp ** 2 + (mu - mu_prior) ** 2) / (2.0 * sigma_prior ** 2) - 0.5)
    samples = jnp.exp(mu + sp * eps) / temp
    w = jax.nn.softmax(samples, axis=-1)
    ctx = w @ V
    mean = ctx.mean(-1, keepdims=True)
    var = ((ctx - mean) ** 2).mean(-1, keepdims=True)
    out = (ctx - mean) / jnp.sqrt(var + 1e-5) * p["gamma"] + p["beta"]
    return out, kl


def init_params(key, dim, scale=0.05):
    ks = jax.random.split(key, 8)
    return {
        # weights stored as [in, out] (transposed relative to torch nn.Linear)
        "W1": scale * jax.random.normal(ks[0], (dim, dim), jnp.float32),
        "b1": scale * jax.random.normal(ks[1], (dim,), jnp.float32),
        "w2": scale * jax.random.normal(ks[2], (dim,), jnp.float32),
        "b2": jnp.float32(0.01),
        "Wp": scale * jax.random.normal(ks[3], (2 * dim, dim), jnp.float32),
        "bp": scale * jax.random.normal(ks[4], (dim,), jnp.float32),
        "w_mu": scale * jax.random.normal(ks[5], (dim,), jnp.float32),
        "b_mu": jnp.float32(0.02),
        "w_lv": scale * jax.random.normal(ks[6], (dim,), jnp.float32),
        "b_lv": jnp.float32(-0.1),
        "gamma": jnp.ones((dim,), jnp.float32),   # LayerNorm default init
        "beta": jnp.zeros((dim,), jnp.float32),
    }


if __name__ == "__main__":
    DIM, NQ, NK = 32, 32, 256
    SIGMA, TEMP = 0.5, 1.0

    key = jax.random.PRNGKey(0)
    kq, kk, kv, ke, kp = jax.random.split(key, 5)
    Q = jax.random.normal(kq, (NQ, DIM), jnp.float32)
    K = jax.random.normal(kk, (NK, DIM), jnp.float32)
    V = jax.random.normal(kv, (NK, DIM), jnp.float32)
    eps = jax.random.normal(ke, (NQ, NK), jnp.float32)
    params = init_params(kp, DIM)

    out_ref, kl_ref = bttn_reference(Q, K, V, eps, params, sigma=SIGMA, temp=TEMP)

    # 1) exact-parity run: f32 elementwise path, 2x2 grid — exercises the
    #    parallel query axis and the online-softmax / KL key reduction.
    out, kl = bttn_forward(Q, K, V, eps, params, sigma=SIGMA, temp=TEMP,
                           tq=16, nkt=128, compute_dtype=jnp.float32)
    out = jax.block_until_ready(out)
    kl = jax.block_until_ready(kl)
    # bf16 MXU operands for the context matmul -> slightly looser tolerance.
    assert jnp.allclose(out, out_ref, atol=2e-2, rtol=2e-2), "context mismatch (f32)"
    assert jnp.allclose(kl, kl_ref, atol=1e-4, rtol=1e-4), "kl mismatch (f32)"

    # 2) default run: generation-aware tiles + bf16 elementwise on v6e/v7x
    #    (f32 elsewhere); looser tolerances cover the bf16 latent path.
    out2, kl2 = bttn_forward(Q, K, V, eps, params, sigma=SIGMA, temp=TEMP)
    out2 = jax.block_until_ready(out2)
    kl2 = jax.block_until_ready(kl2)
    assert jnp.allclose(out2, out_ref, atol=1e-1, rtol=1e-1), "context mismatch (auto)"
    assert jnp.allclose(kl2, kl_ref, atol=5e-2, rtol=5e-2), "kl mismatch (auto)"

    print("KERNEL_OK")
</pallas_src>

<mosaic_0001>
module attributes {stable_mosaic.version = 11 : i64} {
  func.func @_bttn_kernel(%arg0: i32, %arg1: i32, %arg2: memref<16x32xf32, #tpu.memory_space<vmem>>, %arg3: memref<32x128xf32, #tpu.memory_space<vmem>>, %arg4: memref<1x128xf32, #tpu.memory_space<vmem>>, %arg5: memref<16x128xf32, #tpu.memory_space<vmem>>, %arg6: memref<128x32xbf16, #tpu.memory_space<vmem>>, %arg7: memref<2x32xf32, #tpu.memory_space<vmem>>, %arg8: memref<66xf32, #tpu.memory_space<smem>>, %arg9: memref<16x32xf32, #tpu.memory_space<vmem>>, %arg10: memref<16x1xf32, #tpu.memory_space<vmem>>, %arg11: memref<16x1xf32, #tpu.memory_space<vmem>>, %arg12: memref<16x1xf32, #tpu.memory_space<vmem>>, %arg13: memref<16x32xf32, #tpu.memory_space<vmem>>, %arg14: memref<16x1xf32, #tpu.memory_space<vmem>>) attributes {dimension_semantics = [#tpu.dimension_semantics<parallel>, #tpu.dimension_semantics<arbitrary>], iteration_bounds = array<i64: 2, 2>, scalar_prefetch = 0 : i64, scratch_operands = 4 : i64, tpu.core_type = #tpu.core_type<tc>, window_params = [{transform_indices = @transform_0, window_bounds = array<i64: 16, 32>}, {transform_indices = @transform_1, window_bounds = array<i64: 32, 128>}, {transform_indices = @transform_2, window_bounds = array<i64: 1, 128>}, {transform_indices = @transform_3, window_bounds = array<i64: 16, 128>}, {transform_indices = @transform_4, window_bounds = array<i64: 128, 32>}, {pipeline_mode = #tpu.pipeline_mode<synchronous>, transform_indices = @transform_5, window_bounds = array<i64: 2, 32>}, {transform_indices = @transform_6, window_bounds = array<i64: 66>}, {transform_indices = @transform_7, window_bounds = array<i64: 16, 32>}, {transform_indices = @transform_8, window_bounds = array<i64: 16, 1>}]} {
    %c0_i32 = arith.constant 0 : i32
    %0 = arith.cmpi eq, %arg1, %c0_i32 : i32
    %1 = arith.extui %0 : i1 to i32
    %c0_i32_0 = arith.constant 0 : i32
    %2 = arith.cmpi ne, %1, %c0_i32_0 : i32
    scf.if %2 {
      %cst_72 = arith.constant 0xFF800000 : f32
      %552 = vector.broadcast %cst_72 : f32 to vector<16x1xf32>
      %c0_73 = arith.constant 0 : index
      %c0_74 = arith.constant 0 : index
      %553 = vector.load %arg11[%c0_73, %c0_74] : memref<16x1xf32, #tpu.memory_space<vmem>>, vector<16x1xf32>
      tpu.vector_store %arg11[%c0_73, %c0_74], %552 {strides = array<i32>} : memref<16x1xf32, #tpu.memory_space<vmem>>, vector<16x1xf32>,
      %cst_75 = arith.constant 0.000000e+00 : f32
      %554 = vector.broadcast %cst_75 : f32 to vector<16x1xf32>
      %c0_76 = arith.constant 0 : index
      %c0_77 = arith.constant 0 : index
      %555 = vector.load %arg12[%c0_76, %c0_77] : memref<16x1xf32, #tpu.memory_space<vmem>>, vector<16x1xf32>
      tpu.vector_store %arg12[%c0_76, %c0_77], %554 {strides = array<i32>} : memref<16x1xf32, #tpu.memory_space<vmem>>, vector<16x1xf32>,
      %cst_78 = arith.constant 0.000000e+00 : f32
      %556 = vector.broadcast %cst_78 : f32 to vector<16x32xf32>
      %c0_79 = arith.constant 0 : index
      %c0_80 = arith.constant 0 : index
      %557 = vector.load %arg13[%c0_79, %c0_80] : memref<16x32xf32, #tpu.memory_space<vmem>>, vector<16x32xf32>
      tpu.vector_store %arg13[%c0_79, %c0_80], %556 {strides = array<i32>} : memref<16x32xf32, #tpu.memory_space<vmem>>, vector<16x32xf32>,
      %cst_81 = arith.constant 0.000000e+00 : f32
      %558 = vector.broadcast %cst_81 : f32 to vector<16x1xf32>
      %c0_82 = arith.constant 0 : index
      %c0_83 = arith.constant 0 : index
      %559 = vector.load %arg14[%c0_82, %c0_83] : memref<16x1xf32, #tpu.memory_space<vmem>>, vector<16x1xf32>
      tpu.vector_store %arg14[%c0_82, %c0_83], %558 {strides = array<i32>} : memref<16x1xf32, #tpu.memory_space<vmem>>, vector<16x1xf32>,
    } else {
    }
    %c0 = arith.constant 0 : index
    %c0_1 = arith.constant 0 : index
    %3 = vector.load %arg2[%c0, %c0_1] : memref<16x32xf32, #tpu.memory_space<vmem>>, vector<16x32xf32>
    %c0_2 = arith.constant 0 : index
    %c0_3 = arith.constant 0 : index
    %4 = vector.load %arg3[%c0_2, %c0_3] : memref<32x128xf32, #tpu.memory_space<vmem>>, vector<32x128xf32>
    %cst = arith.constant 0.000000e+00 : f32
    %5 = vector.broadcast %cst : f32 to vector<16x128xf32>
    %cst_4 = arith.constant 0.000000e+00 : f32
    %6 = vector.broadcast %cst_4 : f32 to vector<16x128xf32>
    %7 = vector.extract_strided_slice %3 {offsets = [0, 0], sizes = [16, 1], strides = [1, 1]} : vector<16x32xf32> to vector<16x1xf32>
    %8 = vector.extract_strided_slice %4 {offsets = [0, 0], sizes = [1, 128], strides = [1, 1]} : vector<32x128xf32> to vector<1x128xf32>
    %9 = vector.broadcast %7 : vector<16x1xf32> to vector<16x128xf32>
    %10 = vector.broadcast %8 : vector<1x128xf32> to vector<16x128xf32>
    %11 = arith.addf %9, %10 : vector<16x128xf32>
    %cst_5 = arith.constant 0.000000e+00 : f32
    %12 = vector.broadcast %cst_5 : f32 to vector<16x128xf32>
    %13 = arith.maximumf %11, %12 : vector<16x128xf32>
    %c0_6 = arith.constant 0 : index
    %14 = memref.load %arg8[%c0_6] : memref<66xf32, #tpu.memory_space<smem>>
    %c32 = arith.constant 32 : index
    %15 = memref.load %arg8[%c32] : memref<66xf32, #tpu.memory_space<smem>>
    %16 = vector.broadcast %14 : f32 to vector<16x128xf32>
    %17 = arith.mulf %13, %16 : vector<16x128xf32>
    %18 = arith.addf %5, %17 : vector<16x128xf32>
    %19 = vector.broadcast %15 : f32 to vector<16x128xf32>
    %20 = arith.mulf %13, %19 : vector<16x128xf32>
    %21 = arith.addf %6, %20 : vector<16x128xf32>
    %22 = vector.extract_strided_slice %3 {offsets = [0, 1], sizes = [16, 1], strides = [1, 1]} : vector<16x32xf32> to vector<16x1xf32>
    %23 = vector.extract_strided_slice %4 {offsets = [1, 0], sizes = [1, 128], strides = [1, 1]} : vector<32x128xf32> to vector<1x128xf32>
    %24 = vector.broadcast %22 : vector<16x1xf32> to vector<16x128xf32>
    %25 = vector.broadcast %23 : vector<1x128xf32> to vector<16x128xf32>
    %26 = arith.addf %24, %25 : vector<16x128xf32>
    %cst_7 = arith.constant 0.000000e+00 : f32
    %27 = vector.broadcast %cst_7 : f32 to vector<16x128xf32>
    %28 = arith.maximumf %26, %27 : vector<16x128xf32>
    %c1 = arith.constant 1 : index
    %29 = memref.load %arg8[%c1] : memref<66xf32, #tpu.memory_space<smem>>
    %c33 = arith.constant 33 : index
    %30 = memref.load %arg8[%c33] : memref<66xf32, #tpu.memory_space<smem>>
    %31 = vector.broadcast %29 : f32 to vector<16x128xf32>
    %32 = arith.mulf %28, %31 : vector<16x128xf32>
    %33 = arith.addf %18, %32 : vector<16x128xf32>
    %34 = vector.broadcast %30 : f32 to vector<16x128xf32>
    %35 = arith.mulf %28, %34 : vector<16x128xf32>
    %36 = arith.addf %21, %35 : vector<16x128xf32>
    %37 = vector.extract_strided_slice %3 {offsets = [0, 2], sizes = [16, 1], strides = [1, 1]} : vector<16x32xf32> to vector<16x1xf32>
    %38 = vector.extract_strided_slice %4 {offsets = [2, 0], sizes = [1, 128], strides = [1, 1]} : vector<32x128xf32> to vector<1x128xf32>
    %39 = vector.broadcast %37 : vector<16x1xf32> to vector<16x128xf32>
    %40 = vector.broadcast %38 : vector<1x128xf32> to vector<16x128xf32>
    %41 = arith.addf %39, %40 : vector<16x128xf32>
    %cst_8 = arith.constant 0.000000e+00 : f32
    %42 = vector.broadcast %cst_8 : f32 to vector<16x128xf32>
    %43 = arith.maximumf %41, %42 : vector<16x128xf32>
    %c2 = arith.constant 2 : index
    %44 = memref.load %arg8[%c2] : memref<66xf32, #tpu.memory_space<smem>>
    %c34 = arith.constant 34 : index
    %45 = memref.load %arg8[%c34] : memref<66xf32, #tpu.memory_space<smem>>
    %46 = vector.broadcast %44 : f32 to vector<16x128xf32>
    %47 = arith.mulf %43, %46 : vector<16x128xf32>
    %48 = arith.addf %33, %47 : vector<16x128xf32>
    %49 = vector.broadcast %45 : f32 to vector<16x128xf32>
    %50 = arith.mulf %43, %49 : vector<16x128xf32>
    %51 = arith.addf %36, %50 : vector<16x128xf32>
    %52 = vector.extract_strided_slice %3 {offsets = [0, 3], sizes = [16, 1], strides = [1, 1]} : vector<16x32xf32> to vector<16x1xf32>
    %53 = vector.extract_strided_slice %4 {offsets = [3, 0], sizes = [1, 128], strides = [1, 1]} : vector<32x128xf32> to vector<1x128xf32>
    %54 = vector.broadcast %52 : vector<16x1xf32> to vector<16x128xf32>
    %55 = vector.broadcast %53 : vector<1x128xf32> to vector<16x128xf32>
    %56 = arith.addf %54, %55 : vector<16x128xf32>
    %cst_9 = arith.constant 0.000000e+00 : f32
    %57 = vector.broadcast %cst_9 : f32 to vector<16x128xf32>
    %58 = arith.maximumf %56, %57 : vector<16x128xf32>
    %c3 = arith.constant 3 : index
    %59 = memref.load %arg8[%c3] : memref<66xf32, #tpu.memory_space<smem>>
    %c35 = arith.constant 35 : index
    %60 = memref.load %arg8[%c35] : memref<66xf32, #tpu.memory_space<smem>>
    %61 = vector.broadcast %59 : f32 to vector<16x128xf32>
    %62 = arith.mulf %58, %61 : vector<16x128xf32>
    %63 = arith.addf %48, %62 : vector<16x128xf32>
    %64 = vector.broadcast %60 : f32 to vector<16x128xf32>
    %65 = arith.mulf %58, %64 : vector<16x128xf32>
    %66 = arith.addf %51, %65 : vector<16x128xf32>
    %67 = vector.extract_strided_slice %3 {offsets = [0, 4], sizes = [16, 1], strides = [1, 1]} : vector<16x32xf32> to vector<16x1xf32>
    %68 = vector.extract_strided_slice %4 {offsets = [4, 0], sizes = [1, 128], strides = [1, 1]} : vector<32x128xf32> to vector<1x128xf32>
    %69 = vector.broadcast %67 : vector<16x1xf32> to vector<16x128xf32>
    %70 = vector.broadcast %68 : vector<1x128xf32> to vector<16x128xf32>
    %71 = arith.addf %69, %70 : vector<16x128xf32>
    %cst_10 = arith.constant 0.000000e+00 : f32
    %72 = vector.broadcast %cst_10 : f32 to vector<16x128xf32>
    %73 = arith.maximumf %71, %72 : vector<16x128xf32>
    %c4 = arith.constant 4 : index
    %74 = memref.load %arg8[%c4] : memref<66xf32, #tpu.memory_space<smem>>
    %c36 = arith.constant 36 : index
    %75 = memref.load %arg8[%c36] : memref<66xf32, #tpu.memory_space<smem>>
    %76 = vector.broadcast %74 : f32 to vector<16x128xf32>
    %77 = arith.mulf %73, %76 : vector<16x128xf32>
    %78 = arith.addf %63, %77 : vector<16x128xf32>
    %79 = vector.broadcast %75 : f32 to vector<16x128xf32>
    %80 = arith.mulf %73, %79 : vector<16x128xf32>
    %81 = arith.addf %66, %80 : vector<16x128xf32>
    %82 = vector.extract_strided_slice %3 {offsets = [0, 5], sizes = [16, 1], strides = [1, 1]} : vector<16x32xf32> to vector<16x1xf32>
    %83 = vector.extract_strided_slice %4 {offsets = [5, 0], sizes = [1, 128], strides = [1, 1]} : vector<32x128xf32> to vector<1x128xf32>
    %84 = vector.broadcast %82 : vector<16x1xf32> to vector<16x128xf32>
    %85 = vector.broadcast %83 : vector<1x128xf32> to vector<16x128xf32>
    %86 = arith.addf %84, %85 : vector<16x128xf32>
    %cst_11 = arith.constant 0.000000e+00 : f32
    %87 = vector.broadcast %cst_11 : f32 to vector<16x128xf32>
    %88 = arith.maximumf %86, %87 : vector<16x128xf32>
    %c5 = arith.constant 5 : index
    %89 = memref.load %arg8[%c5] : memref<66xf32, #tpu.memory_space<smem>>
    %c37 = arith.constant 37 : index
    %90 = memref.load %arg8[%c37] : memref<66xf32, #tpu.memory_space<smem>>
    %91 = vector.broadcast %89 : f32 to vector<16x128xf32>
    %92 = arith.mulf %88, %91 : vector<16x128xf32>
    %93 = arith.addf %78, %92 : vector<16x128xf32>
    %94 = vector.broadcast %90 : f32 to vector<16x128xf32>
    %95 = arith.mulf %88, %94 : vector<16x128xf32>
    %96 = arith.addf %81, %95 : vector<16x128xf32>
    %97 = vector.extract_strided_slice %3 {offsets = [0, 6], sizes = [16, 1], strides = [1, 1]} : vector<16x32xf32> to vector<16x1xf32>
    %98 = vector.extract_strided_slice %4 {offsets = [6, 0], sizes = [1, 128], strides = [1, 1]} : vector<32x128xf32> to vector<1x128xf32>
    %99 = vector.broadcast %97 : vector<16x1xf32> to vector<16x128xf32>
    %100 = vector.broadcast %98 : vector<1x128xf32> to vector<16x128xf32>
    %101 = arith.addf %99, %100 : vector<16x128xf32>
    %cst_12 = arith.constant 0.000000e+00 : f32
    %102 = vector.broadcast %cst_12 : f32 to vector<16x128xf32>
    %103 = arith.maximumf %101, %102 : vector<16x128xf32>
    %c6 = arith.constant 6 : index
    %104 = memref.load %arg8[%c6] : memref<66xf32, #tpu.memory_space<smem>>
    %c38 = arith.constant 38 : index
    %105 = memref.load %arg8[%c38] : memref<66xf32, #tpu.memory_space<smem>>
    %106 = vector.broadcast %104 : f32 to vector<16x128xf32>
    %107 = arith.mulf %103, %106 : vector<16x128xf32>
    %108 = arith.addf %93, %107 : vector<16x128xf32>
    %109 = vector.broadcast %105 : f32 to vector<16x128xf32>
    %110 = arith.mulf %103, %109 : vector<16x128xf32>
    %111 = arith.addf %96, %110 : vector<16x128xf32>
    %112 = vector.extract_strided_slice %3 {offsets = [0, 7], sizes = [16, 1], strides = [1, 1]} : vector<16x32xf32> to vector<16x1xf32>
    %113 = vector.extract_strided_slice %4 {offsets = [7, 0], sizes = [1, 128], strides = [1, 1]} : vector<32x128xf32> to vector<1x128xf32>
    %114 = vector.broadcast %112 : vector<16x1xf32> to vector<16x128xf32>
    %115 = vector.broadcast %113 : vector<1x128xf32> to vector<16x128xf32>
    %116 = arith.addf %114, %115 : vector<16x128xf32>
    %cst_13 = arith.constant 0.000000e+00 : f32
    %117 = vector.broadcast %cst_13 : f32 to vector<16x128xf32>
    %118 = arith.maximumf %116, %117 : vector<16x128xf32>
    %c7 = arith.constant 7 : index
    %119 = memref.load %arg8[%c7] : memref<66xf32, #tpu.memory_space<smem>>
    %c39 = arith.constant 39 : index
    %120 = memref.load %arg8[%c39] : memref<66xf32, #tpu.memory_space<smem>>
    %121 = vector.broadcast %119 : f32 to vector<16x128xf32>
    %122 = arith.mulf %118, %121 : vector<16x128xf32>
    %123 = arith.addf %108, %122 : vector<16x128xf32>
    %124 = vector.broadcast %120 : f32 to vector<16x128xf32>
    %125 = arith.mulf %118, %124 : vector<16x128xf32>
    %126 = arith.addf %111, %125 : vector<16x128xf32>
    %127 = vector.extract_strided_slice %3 {offsets = [0, 8], sizes = [16, 1], strides = [1, 1]} : vector<16x32xf32> to vector<16x1xf32>
    %128 = vector.extract_strided_slice %4 {offsets = [8, 0], sizes = [1, 128], strides = [1, 1]} : vector<32x128xf32> to vector<1x128xf32>
    %129 = vector.broadcast %127 : vector<16x1xf32> to vector<16x128xf32>
    %130 = vector.broadcast %128 : vector<1x128xf32> to vector<16x128xf32>
    %131 = arith.addf %129, %130 : vector<16x128xf32>
    %cst_14 = arith.constant 0.000000e+00 : f32
    %132 = vector.broadcast %cst_14 : f32 to vector<16x128xf32>
    %133 = arith.maximumf %131, %132 : vector<16x128xf32>
    %c8 = arith.constant 8 : index
    %134 = memref.load %arg8[%c8] : memref<66xf32, #tpu.memory_space<smem>>
    %c40 = arith.constant 40 : index
    %135 = memref.load %arg8[%c40] : memref<66xf32, #tpu.memory_space<smem>>
    %136 = vector.broadcast %134 : f32 to vector<16x128xf32>
    %137 = arith.mulf %133, %136 : vector<16x128xf32>
    %138 = arith.addf %123, %137 : vector<16x128xf32>
    %139 = vector.broadcast %135 : f32 to vector<16x128xf32>
    %140 = arith.mulf %133, %139 : vector<16x128xf32>
    %141 = arith.addf %126, %140 : vector<16x128xf32>
    %142 = vector.extract_strided_slice %3 {offsets = [0, 9], sizes = [16, 1], strides = [1, 1]} : vector<16x32xf32> to vector<16x1xf32>
    %143 = vector.extract_strided_slice %4 {offsets = [9, 0], sizes = [1, 128], strides = [1, 1]} : vector<32x128xf32> to vector<1x128xf32>
    %144 = vector.broadcast %142 : vector<16x1xf32> to vector<16x128xf32>
    %145 = vector.broadcast %143 : vector<1x128xf32> to vector<16x128xf32>
    %146 = arith.addf %144, %145 : vector<16x128xf32>
    %cst_15 = arith.constant 0.000000e+00 : f32
    %147 = vector.broadcast %cst_15 : f32 to vector<16x128xf32>
    %148 = arith.maximumf %146, %147 : vector<16x128xf32>
    %c9 = arith.constant 9 : index
    %149 = memref.load %arg8[%c9] : memref<66xf32, #tpu.memory_space<smem>>
    %c41 = arith.constant 41 : index
    %150 = memref.load %arg8[%c41] : memref<66xf32, #tpu.memory_space<smem>>
    %151 = vector.broadcast %149 : f32 to vector<16x128xf32>
    %152 = arith.mulf %148, %151 : vector<16x128xf32>
    %153 = arith.addf %138, %152 : vector<16x128xf32>
    %154 = vector.broadcast %150 : f32 to vector<16x128xf32>
    %155 = arith.mulf %148, %154 : vector<16x128xf32>
    %156 = arith.addf %141, %155 : vector<16x128xf32>
    %157 = vector.extract_strided_slice %3 {offsets = [0, 10], sizes = [16, 1], strides = [1, 1]} : vector<16x32xf32> to vector<16x1xf32>
    %158 = vector.extract_strided_slice %4 {offsets = [10, 0], sizes = [1, 128], strides = [1, 1]} : vector<32x128xf32> to vector<1x128xf32>
    %159 = vector.broadcast %157 : vector<16x1xf32> to vector<16x128xf32>
    %160 = vector.broadcast %158 : vector<1x128xf32> to vector<16x128xf32>
    %161 = arith.addf %159, %160 : vector<16x128xf32>
    %cst_16 = arith.constant 0.000000e+00 : f32
    %162 = vector.broadcast %cst_16 : f32 to vector<16x128xf32>
    %163 = arith.maximumf %161, %162 : vector<16x128xf32>
    %c10 = arith.constant 10 : index
    %164 = memref.load %arg8[%c10] : memref<66xf32, #tpu.memory_space<smem>>
    %c42 = arith.constant 42 : index
    %165 = memref.load %arg8[%c42] : memref<66xf32, #tpu.memory_space<smem>>
    %166 = vector.broadcast %164 : f32 to vector<16x128xf32>
    %167 = arith.mulf %163, %166 : vector<16x128xf32>
    %168 = arith.addf %153, %167 : vector<16x128xf32>
    %169 = vector.broadcast %165 : f32 to vector<16x128xf32>
    %170 = arith.mulf %163, %169 : vector<16x128xf32>
    %171 = arith.addf %156, %170 : vector<16x128xf32>
    %172 = vector.extract_strided_slice %3 {offsets = [0, 11], sizes = [16, 1], strides = [1, 1]} : vector<16x32xf32> to vector<16x1xf32>
    %173 = vector.extract_strided_slice %4 {offsets = [11, 0], sizes = [1, 128], strides = [1, 1]} : vector<32x128xf32> to vector<1x128xf32>
    %174 = vector.broadcast %172 : vector<16x1xf32> to vector<16x128xf32>
    %175 = vector.broadcast %173 : vector<1x128xf32> to vector<16x128xf32>
    %176 = arith.addf %174, %175 : vector<16x128xf32>
    %cst_17 = arith.constant 0.000000e+00 : f32
    %177 = vector.broadcast %cst_17 : f32 to vector<16x128xf32>
    %178 = arith.maximumf %176, %177 : vector<16x128xf32>
    %c11 = arith.constant 11 : index
    %179 = memref.load %arg8[%c11] : memref<66xf32, #tpu.memory_space<smem>>
    %c43 = arith.constant 43 : index
    %180 = memref.load %arg8[%c43] : memref<66xf32, #tpu.memory_space<smem>>
    %181 = vector.broadcast %179 : f32 to vector<16x128xf32>
    %182 = arith.mulf %178, %181 : vector<16x128xf32>
    %183 = arith.addf %168, %182 : vector<16x128xf32>
    %184 = vector.broadcast %180 : f32 to vector<16x128xf32>
    %185 = arith.mulf %178, %184 : vector<16x128xf32>
    %186 = arith.addf %171, %185 : vector<16x128xf32>
    %187 = vector.extract_strided_slice %3 {offsets = [0, 12], sizes = [16, 1], strides = [1, 1]} : vector<16x32xf32> to vector<16x1xf32>
    %188 = vector.extract_strided_slice %4 {offsets = [12, 0], sizes = [1, 128], strides = [1, 1]} : vector<32x128xf32> to vector<1x128xf32>
    %189 = vector.broadcast %187 : vector<16x1xf32> to vector<16x128xf32>
    %190 = vector.broadcast %188 : vector<1x128xf32> to vector<16x128xf32>
    %191 = arith.addf %189, %190 : vector<16x128xf32>
    %cst_18 = arith.constant 0.000000e+00 : f32
    %192 = vector.broadcast %cst_18 : f32 to vector<16x128xf32>
    %193 = arith.maximumf %191, %192 : vector<16x128xf32>
    %c12 = arith.constant 12 : index
    %194 = memref.load %arg8[%c12] : memref<66xf32, #tpu.memory_space<smem>>
    %c44 = arith.constant 44 : index
    %195 = memref.load %arg8[%c44] : memref<66xf32, #tpu.memory_space<smem>>
    %196 = vector.broadcast %194 : f32 to vector<16x128xf32>
    %197 = arith.mulf %193, %196 : vector<16x128xf32>
    %198 = arith.addf %183, %197 : vector<16x128xf32>
    %199 = vector.broadcast %195 : f32 to vector<16x128xf32>
    %200 = arith.mulf %193, %199 : vector<16x128xf32>
    %201 = arith.addf %186, %200 : vector<16x128xf32>
    %202 = vector.extract_strided_slice %3 {offsets = [0, 13], sizes = [16, 1], strides = [1, 1]} : vector<16x32xf32> to vector<16x1xf32>
    %203 = vector.extract_strided_slice %4 {offsets = [13, 0], sizes = [1, 128], strides = [1, 1]} : vector<32x128xf32> to vector<1x128xf32>
    %204 = vector.broadcast %202 : vector<16x1xf32> to vector<16x128xf32>
    %205 = vector.broadcast %203 : vector<1x128xf32> to vector<16x128xf32>
    %206 = arith.addf %204, %205 : vector<16x128xf32>
    %cst_19 = arith.constant 0.000000e+00 : f32
    %207 = vector.broadcast %cst_19 : f32 to vector<16x128xf32>
    %208 = arith.maximumf %206, %207 : vector<16x128xf32>
    %c13 = arith.constant 13 : index
    %209 = memref.load %arg8[%c13] : memref<66xf32, #tpu.memory_space<smem>>
    %c45 = arith.constant 45 : index
    %210 = memref.load %arg8[%c45] : memref<66xf32, #tpu.memory_space<smem>>
    %211 = vector.broadcast %209 : f32 to vector<16x128xf32>
    %212 = arith.mulf %208, %211 : vector<16x128xf32>
    %213 = arith.addf %198, %212 : vector<16x128xf32>
    %214 = vector.broadcast %210 : f32 to vector<16x128xf32>
    %215 = arith.mulf %208, %214 : vector<16x128xf32>
    %216 = arith.addf %201, %215 : vector<16x128xf32>
    %217 = vector.extract_strided_slice %3 {offsets = [0, 14], sizes = [16, 1], strides = [1, 1]} : vector<16x32xf32> to vector<16x1xf32>
    %218 = vector.extract_strided_slice %4 {offsets = [14, 0], sizes = [1, 128], strides = [1, 1]} : vector<32x128xf32> to vector<1x128xf32>
    %219 = vector.broadcast %217 : vector<16x1xf32> to vector<16x128xf32>
    %220 = vector.broadcast %218 : vector<1x128xf32> to vector<16x128xf32>
    %221 = arith.addf %219, %220 : vector<16x128xf32>
    %cst_20 = arith.constant 0.000000e+00 : f32
    %222 = vector.broadcast %cst_20 : f32 to vector<16x128xf32>
    %223 = arith.maximumf %221, %222 : vector<16x128xf32>
    %c14 = arith.constant 14 : index
    %224 = memref.load %arg8[%c14] : memref<66xf32, #tpu.memory_space<smem>>
    %c46 = arith.constant 46 : index
    %225 = memref.load %arg8[%c46] : memref<66xf32, #tpu.memory_space<smem>>
    %226 = vector.broadcast %224 : f32 to vector<16x128xf32>
    %227 = arith.mulf %223, %226 : vector<16x128xf32>
    %228 = arith.addf %213, %227 : vector<16x128xf32>
    %229 = vector.broadcast %225 : f32 to vector<16x128xf32>
    %230 = arith.mulf %223, %229 : vector<16x128xf32>
    %231 = arith.addf %216, %230 : vector<16x128xf32>
    %232 = vector.extract_strided_slice %3 {offsets = [0, 15], sizes = [16, 1], strides = [1, 1]} : vector<16x32xf32> to vector<16x1xf32>
    %233 = vector.extract_strided_slice %4 {offsets = [15, 0], sizes = [1, 128], strides = [1, 1]} : vector<32x128xf32> to vector<1x128xf32>
    %234 = vector.broadcast %232 : vector<16x1xf32> to vector<16x128xf32>
    %235 = vector.broadcast %233 : vector<1x128xf32> to vector<16x128xf32>
    %236 = arith.addf %234, %235 : vector<16x128xf32>
    %cst_21 = arith.constant 0.000000e+00 : f32
    %237 = vector.broadcast %cst_21 : f32 to vector<16x128xf32>
    %238 = arith.maximumf %236, %237 : vector<16x128xf32>
    %c15 = arith.constant 15 : index
    %239 = memref.load %arg8[%c15] : memref<66xf32, #tpu.memory_space<smem>>
    %c47 = arith.constant 47 : index
    %240 = memref.load %arg8[%c47] : memref<66xf32, #tpu.memory_space<smem>>
    %241 = vector.broadcast %239 : f32 to vector<16x128xf32>
    %242 = arith.mulf %238, %241 : vector<16x128xf32>
    %243 = arith.addf %228, %242 : vector<16x128xf32>
    %244 = vector.broadcast %240 : f32 to vector<16x128xf32>
    %245 = arith.mulf %238, %244 : vector<16x128xf32>
    %246 = arith.addf %231, %245 : vector<16x128xf32>
    %247 = vector.extract_strided_slice %3 {offsets = [0, 16], sizes = [16, 1], strides = [1, 1]} : vector<16x32xf32> to vector<16x1xf32>
    %248 = vector.extract_strided_slice %4 {offsets = [16, 0], sizes = [1, 128], strides = [1, 1]} : vector<32x128xf32> to vector<1x128xf32>
    %249 = vector.broadcast %247 : vector<16x1xf32> to vector<16x128xf32>
    %250 = vector.broadcast %248 : vector<1x128xf32> to vector<16x128xf32>
    %251 = arith.addf %249, %250 : vector<16x128xf32>
    %cst_22 = arith.constant 0.000000e+00 : f32
    %252 = vector.broadcast %cst_22 : f32 to vector<16x128xf32>
    %253 = arith.maximumf %251, %252 : vector<16x128xf32>
    %c16 = arith.constant 16 : index
    %254 = memref.load %arg8[%c16] : memref<66xf32, #tpu.memory_space<smem>>
    %c48 = arith.constant 48 : index
    %255 = memref.load %arg8[%c48] : memref<66xf32, #tpu.memory_space<smem>>
    %256 = vector.broadcast %254 : f32 to vector<16x128xf32>
    %257 = arith.mulf %253, %256 : vector<16x128xf32>
    %258 = arith.addf %243, %257 : vector<16x128xf32>
    %259 = vector.broadcast %255 : f32 to vector<16x128xf32>
    %260 = arith.mulf %253, %259 : vector<16x128xf32>
    %261 = arith.addf %246, %260 : vector<16x128xf32>
    %262 = vector.extract_strided_slice %3 {offsets = [0, 17], sizes = [16, 1], strides = [1, 1]} : vector<16x32xf32> to vector<16x1xf32>
    %263 = vector.extract_strided_slice %4 {offsets = [17, 0], sizes = [1, 128], strides = [1, 1]} : vector<32x128xf32> to vector<1x128xf32>
    %264 = vector.broadcast %262 : vector<16x1xf32> to vector<16x128xf32>
    %265 = vector.broadcast %263 : vector<1x128xf32> to vector<16x128xf32>
    %266 = arith.addf %264, %265 : vector<16x128xf32>
    %cst_23 = arith.constant 0.000000e+00 : f32
    %267 = vector.broadcast %cst_23 : f32 to vector<16x128xf32>
    %268 = arith.maximumf %266, %267 : vector<16x128xf32>
    %c17 = arith.constant 17 : index
    %269 = memref.load %arg8[%c17] : memref<66xf32, #tpu.memory_space<smem>>
    %c49 = arith.constant 49 : index
    %270 = memref.load %arg8[%c49] : memref<66xf32, #tpu.memory_space<smem>>
    %271 = vector.broadcast %269 : f32 to vector<16x128xf32>
    %272 = arith.mulf %268, %271 : vector<16x128xf32>
    %273 = arith.addf %258, %272 : vector<16x128xf32>
    %274 = vector.broadcast %270 : f32 to vector<16x128xf32>
    %275 = arith.mulf %268, %274 : vector<16x128xf32>
    %276 = arith.addf %261, %275 : vector<16x128xf32>
    %277 = vector.extract_strided_slice %3 {offsets = [0, 18], sizes = [16, 1], strides = [1, 1]} : vector<16x32xf32> to vector<16x1xf32>
    %278 = vector.extract_strided_slice %4 {offsets = [18, 0], sizes = [1, 128], strides = [1, 1]} : vector<32x128xf32> to vector<1x128xf32>
    %279 = vector.broadcast %277 : vector<16x1xf32> to vector<16x128xf32>
    %280 = vector.broadcast %278 : vector<1x128xf32> to vector<16x128xf32>
    %281 = arith.addf %279, %280 : vector<16x128xf32>
    %cst_24 = arith.constant 0.000000e+00 : f32
    %282 = vector.broadcast %cst_24 : f32 to vector<16x128xf32>
    %283 = arith.maximumf %281, %282 : vector<16x128xf32>
    %c18 = arith.constant 18 : index
    %284 = memref.load %arg8[%c18] : memref<66xf32, #tpu.memory_space<smem>>
    %c50 = arith.constant 50 : index
    %285 = memref.load %arg8[%c50] : memref<66xf32, #tpu.memory_space<smem>>
    %286 = vector.broadcast %284 : f32 to vector<16x128xf32>
    %287 = arith.mulf %283, %286 : vector<16x128xf32>
    %288 = arith.addf %273, %287 : vector<16x128xf32>
    %289 = vector.broadcast %285 : f32 to vector<16x128xf32>
    %290 = arith.mulf %283, %289 : vector<16x128xf32>
    %291 = arith.addf %276, %290 : vector<16x128xf32>
    %292 = vector.extract_strided_slice %3 {offsets = [0, 19], sizes = [16, 1], strides = [1, 1]} : vector<16x32xf32> to vector<16x1xf32>
    %293 = vector.extract_strided_slice %4 {offsets = [19, 0], sizes = [1, 128], strides = [1, 1]} : vector<32x128xf32> to vector<1x128xf32>
    %294 = vector.broadcast %292 : vector<16x1xf32> to vector<16x128xf32>
    %295 = vector.broadcast %293 : vector<1x128xf32> to vector<16x128xf32>
    %296 = arith.addf %294, %295 : vector<16x128xf32>
    %cst_25 = arith.constant 0.000000e+00 : f32
    %297 = vector.broadcast %cst_25 : f32 to vector<16x128xf32>
    %298 = arith.maximumf %296, %297 : vector<16x128xf32>
    %c19 = arith.constant 19 : index
    %299 = memref.load %arg8[%c19] : memref<66xf32, #tpu.memory_space<smem>>
    %c51 = arith.constant 51 : index
    %300 = memref.load %arg8[%c51] : memref<66xf32, #tpu.memory_space<smem>>
    %301 = vector.broadcast %299 : f32 to vector<16x128xf32>
    %302 = arith.mulf %298, %301 : vector<16x128xf32>
    %303 = arith.addf %288, %302 : vector<16x128xf32>
    %304 = vector.broadcast %300 : f32 to vector<16x128xf32>
    %305 = arith.mulf %298, %304 : vector<16x128xf32>
    %306 = arith.addf %291, %305 : vector<16x128xf32>
    %307 = vector.extract_strided_slice %3 {offsets = [0, 20], sizes = [16, 1], strides = [1, 1]} : vector<16x32xf32> to vector<16x1xf32>
    %308 = vector.extract_strided_slice %4 {offsets = [20, 0], sizes = [1, 128], strides = [1, 1]} : vector<32x128xf32> to vector<1x128xf32>
    %309 = vector.broadcast %307 : vector<16x1xf32> to vector<16x128xf32>
    %310 = vector.broadcast %308 : vector<1x128xf32> to vector<16x128xf32>
    %311 = arith.addf %309, %310 : vector<16x128xf32>
    %cst_26 = arith.constant 0.000000e+00 : f32
    %312 = vector.broadcast %cst_26 : f32 to vector<16x128xf32>
    %313 = arith.maximumf %311, %312 : vector<16x128xf32>
    %c20 = arith.constant 20 : index
    %314 = memref.load %arg8[%c20] : memref<66xf32, #tpu.memory_space<smem>>
    %c52 = arith.constant 52 : index
    %315 = memref.load %arg8[%c52] : memref<66xf32, #tpu.memory_space<smem>>
    %316 = vector.broadcast %314 : f32 to vector<16x128xf32>
    %317 = arith.mulf %313, %316 : vector<16x128xf32>
    %318 = arith.addf %303, %317 : vector<16x128xf32>
    %319 = vector.broadcast %315 : f32 to vector<16x128xf32>
    %320 = arith.mulf %313, %319 : vector<16x128xf32>
    %321 = arith.addf %306, %320 : vector<16x128xf32>
    %322 = vector.extract_strided_slice %3 {offsets = [0, 21], sizes = [16, 1], strides = [1, 1]} : vector<16x32xf32> to vector<16x1xf32>
    %323 = vector.extract_strided_slice %4 {offsets = [21, 0], sizes = [1, 128], strides = [1, 1]} : vector<32x128xf32> to vector<1x128xf32>
    %324 = vector.broadcast %322 : vector<16x1xf32> to vector<16x128xf32>
    %325 = vector.broadcast %323 : vector<1x128xf32> to vector<16x128xf32>
    %326 = arith.addf %324, %325 : vector<16x128xf32>
    %cst_27 = arith.constant 0.000000e+00 : f32
    %327 = vector.broadcast %cst_27 : f32 to vector<16x128xf32>
    %328 = arith.maximumf %326, %327 : vector<16x128xf32>
    %c21 = arith.constant 21 : index
    %329 = memref.load %arg8[%c21] : memref<66xf32, #tpu.memory_space<smem>>
    %c53 = arith.constant 53 : index
    %330 = memref.load %arg8[%c53] : memref<66xf32, #tpu.memory_space<smem>>
    %331 = vector.broadcast %329 : f32 to vector<16x128xf32>
    %332 = arith.mulf %328, %331 : vector<16x128xf32>
    %333 = arith.addf %318, %332 : vector<16x128xf32>
    %334 = vector.broadcast %330 : f32 to vector<16x128xf32>
    %335 = arith.mulf %328, %334 : vector<16x128xf32>
    %336 = arith.addf %321, %335 : vector<16x128xf32>
    %337 = vector.extract_strided_slice %3 {offsets = [0, 22], sizes = [16, 1], strides = [1, 1]} : vector<16x32xf32> to vector<16x1xf32>
    %338 = vector.extract_strided_slice %4 {offsets = [22, 0], sizes = [1, 128], strides = [1, 1]} : vector<32x128xf32> to vector<1x128xf32>
    %339 = vector.broadcast %337 : vector<16x1xf32> to vector<16x128xf32>
    %340 = vector.broadcast %338 : vector<1x128xf32> to vector<16x128xf32>
    %341 = arith.addf %339, %340 : vector<16x128xf32>
    %cst_28 = arith.constant 0.000000e+00 : f32
    %342 = vector.broadcast %cst_28 : f32 to vector<16x128xf32>
    %343 = arith.maximumf %341, %342 : vector<16x128xf32>
    %c22 = arith.constant 22 : index
    %344 = memref.load %arg8[%c22] : memref<66xf32, #tpu.memory_space<smem>>
    %c54 = arith.constant 54 : index
    %345 = memref.load %arg8[%c54] : memref<66xf32, #tpu.memory_space<smem>>
    %346 = vector.broadcast %344 : f32 to vector<16x128xf32>
    %347 = arith.mulf %343, %346 : vector<16x128xf32>
    %348 = arith.addf %333, %347 : vector<16x128xf32>
    %349 = vector.broadcast %345 : f32 to vector<16x128xf32>
    %350 = arith.mulf %343, %349 : vector<16x128xf32>
    %351 = arith.addf %336, %350 : vector<16x128xf32>
    %352 = vector.extract_strided_slice %3 {offsets = [0, 23], sizes = [16, 1], strides = [1, 1]} : vector<16x32xf32> to vector<16x1xf32>
    %353 = vector.extract_strided_slice %4 {offsets = [23, 0], sizes = [1, 128], strides = [1, 1]} : vector<32x128xf32> to vector<1x128xf32>
    %354 = vector.broadcast %352 : vector<16x1xf32> to vector<16x128xf32>
    %355 = vector.broadcast %353 : vector<1x128xf32> to vector<16x128xf32>
    %356 = arith.addf %354, %355 : vector<16x128xf32>
    %cst_29 = arith.constant 0.000000e+00 : f32
    %357 = vector.broadcast %cst_29 : f32 to vector<16x128xf32>
    %358 = arith.maximumf %356, %357 : vector<16x128xf32>
    %c23 = arith.constant 23 : index
    %359 = memref.load %arg8[%c23] : memref<66xf32, #tpu.memory_space<smem>>
    %c55 = arith.constant 55 : index
    %360 = memref.load %arg8[%c55] : memref<66xf32, #tpu.memory_space<smem>>
    %361 = vector.broadcast %359 : f32 to vector<16x128xf32>
    %362 = arith.mulf %358, %361 : vector<16x128xf32>
    %363 = arith.addf %348, %362 : vector<16x128xf32>
    %364 = vector.broadcast %360 : f32 to vector<16x128xf32>
    %365 = arith.mulf %358, %364 : vector<16x128xf32>
    %366 = arith.addf %351, %365 : vector<16x128xf32>
    %367 = vector.extract_strided_slice %3 {offsets = [0, 24], sizes = [16, 1], strides = [1, 1]} : vector<16x32xf32> to vector<16x1xf32>
    %368 = vector.extract_strided_slice %4 {offsets = [24, 0], sizes = [1, 128], strides = [1, 1]} : vector<32x128xf32> to vector<1x128xf32>
    %369 = vector.broadcast %367 : vector<16x1xf32> to vector<16x128xf32>
    %370 = vector.broadcast %368 : vector<1x128xf32> to vector<16x128xf32>
    %371 = arith.addf %369, %370 : vector<16x128xf32>
    %cst_30 = arith.constant 0.000000e+00 : f32
    %372 = vector.broadcast %cst_30 : f32 to vector<16x128xf32>
    %373 = arith.maximumf %371, %372 : vector<16x128xf32>
    %c24 = arith.constant 24 : index
    %374 = memref.load %arg8[%c24] : memref<66xf32, #tpu.memory_space<smem>>
    %c56 = arith.constant 56 : index
    %375 = memref.load %arg8[%c56] : memref<66xf32, #tpu.memory_space<smem>>
    %376 = vector.broadcast %374 : f32 to vector<16x128xf32>
    %377 = arith.mulf %373, %376 : vector<16x128xf32>
    %378 = arith.addf %363, %377 : vector<16x128xf32>
    %379 = vector.broadcast %375 : f32 to vector<16x128xf32>
    %380 = arith.mulf %373, %379 : vector<16x128xf32>
    %381 = arith.addf %366, %380 : vector<16x128xf32>
    %382 = vector.extract_strided_slice %3 {offsets = [0, 25], sizes = [16, 1], strides = [1, 1]} : vector<16x32xf32> to vector<16x1xf32>
    %383 = vector.extract_strided_slice %4 {offsets = [25, 0], sizes = [1, 128], strides = [1, 1]} : vector<32x128xf32> to vector<1x128xf32>
    %384 = vector.broadcast %382 : vector<16x1xf32> to vector<16x128xf32>
    %385 = vector.broadcast %383 : vector<1x128xf32> to vector<16x128xf32>
    %386 = arith.addf %384, %385 : vector<16x128xf32>
    %cst_31 = arith.constant 0.000000e+00 : f32
    %387 = vector.broadcast %cst_31 : f32 to vector<16x128xf32>
    %388 = arith.maximumf %386, %387 : vector<16x128xf32>
    %c25 = arith.constant 25 : index
    %389 = memref.load %arg8[%c25] : memref<66xf32, #tpu.memory_space<smem>>
    %c57 = arith.constant 57 : index
    %390 = memref.load %arg8[%c57] : memref<66xf32, #tpu.memory_space<smem>>
    %391 = vector.broadcast %389 : f32 to vector<16x128xf32>
    %392 = arith.mulf %388, %391 : vector<16x128xf32>
    %393 = arith.addf %378, %392 : vector<16x128xf32>
    %394 = vector.broadcast %390 : f32 to vector<16x128xf32>
    %395 = arith.mulf %388, %394 : vector<16x128xf32>
    %396 = arith.addf %381, %395 : vector<16x128xf32>
    %397 = vector.extract_strided_slice %3 {offsets = [0, 26], sizes = [16, 1], strides = [1, 1]} : vector<16x32xf32> to vector<16x1xf32>
    %398 = vector.extract_strided_slice %4 {offsets = [26, 0], sizes = [1, 128], strides = [1, 1]} : vector<32x128xf32> to vector<1x128xf32>
    %399 = vector.broadcast %397 : vector<16x1xf32> to vector<16x128xf32>
    %400 = vector.broadcast %398 : vector<1x128xf32> to vector<16x128xf32>
    %401 = arith.addf %399, %400 : vector<16x128xf32>
    %cst_32 = arith.constant 0.000000e+00 : f32
    %402 = vector.broadcast %cst_32 : f32 to vector<16x128xf32>
    %403 = arith.maximumf %401, %402 : vector<16x128xf32>
    %c26 = arith.constant 26 : index
    %404 = memref.load %arg8[%c26] : memref<66xf32, #tpu.memory_space<smem>>
    %c58 = arith.constant 58 : index
    %405 = memref.load %arg8[%c58] : memref<66xf32, #tpu.memory_space<smem>>
    %406 = vector.broadcast %404 : f32 to vector<16x128xf32>
    %407 = arith.mulf %403, %406 : vector<16x128xf32>
    %408 = arith.addf %393, %407 : vector<16x128xf32>
    %409 = vector.broadcast %405 : f32 to vector<16x128xf32>
    %410 = arith.mulf %403, %409 : vector<16x128xf32>
    %411 = arith.addf %396, %410 : vector<16x128xf32>
    %412 = vector.extract_strided_slice %3 {offsets = [0, 27], sizes = [16, 1], strides = [1, 1]} : vector<16x32xf32> to vector<16x1xf32>
    %413 = vector.extract_strided_slice %4 {offsets = [27, 0], sizes = [1, 128], strides = [1, 1]} : vector<32x128xf32> to vector<1x128xf32>
    %414 = vector.broadcast %412 : vector<16x1xf32> to vector<16x128xf32>
    %415 = vector.broadcast %413 : vector<1x128xf32> to vector<16x128xf32>
    %416 = arith.addf %414, %415 : vector<16x128xf32>
    %cst_33 = arith.constant 0.000000e+00 : f32
    %417 = vector.broadcast %cst_33 : f32 to vector<16x128xf32>
    %418 = arith.maximumf %416, %417 : vector<16x128xf32>
    %c27 = arith.constant 27 : index
    %419 = memref.load %arg8[%c27] : memref<66xf32, #tpu.memory_space<smem>>
    %c59 = arith.constant 59 : index
    %420 = memref.load %arg8[%c59] : memref<66xf32, #tpu.memory_space<smem>>
    %421 = vector.broadcast %419 : f32 to vector<16x128xf32>
    %422 = arith.mulf %418, %421 : vector<16x128xf32>
    %423 = arith.addf %408, %422 : vector<16x128xf32>
    %424 = vector.broadcast %420 : f32 to vector<16x128xf32>
    %425 = arith.mulf %418, %424 : vector<16x128xf32>
    %426 = arith.addf %411, %425 : vector<16x128xf32>
    %427 = vector.extract_strided_slice %3 {offsets = [0, 28], sizes = [16, 1], strides = [1, 1]} : vector<16x32xf32> to vector<16x1xf32>
    %428 = vector.extract_strided_slice %4 {offsets = [28, 0], sizes = [1, 128], strides = [1, 1]} : vector<32x128xf32> to vector<1x128xf32>
    %429 = vector.broadcast %427 : vector<16x1xf32> to vector<16x128xf32>
    %430 = vector.broadcast %428 : vector<1x128xf32> to vector<16x128xf32>
    %431 = arith.addf %429, %430 : vector<16x128xf32>
    %cst_34 = arith.constant 0.000000e+00 : f32
    %432 = vector.broadcast %cst_34 : f32 to vector<16x128xf32>
    %433 = arith.maximumf %431, %432 : vector<16x128xf32>
    %c28 = arith.constant 28 : index
    %434 = memref.load %arg8[%c28] : memref<66xf32, #tpu.memory_space<smem>>
    %c60 = arith.constant 60 : index
    %435 = memref.load %arg8[%c60] : memref<66xf32, #tpu.memory_space<smem>>
    %436 = vector.broadcast %434 : f32 to vector<16x128xf32>
    %437 = arith.mulf %433, %436 : vector<16x128xf32>
    %438 = arith.addf %423, %437 : vector<16x128xf32>
    %439 = vector.broadcast %435 : f32 to vector<16x128xf32>
    %440 = arith.mulf %433, %439 : vector<16x128xf32>
    %441 = arith.addf %426, %440 : vector<16x128xf32>
    %442 = vector.extract_strided_slice %3 {offsets = [0, 29], sizes = [16, 1], strides = [1, 1]} : vector<16x32xf32> to vector<16x1xf32>
    %443 = vector.extract_strided_slice %4 {offsets = [29, 0], sizes = [1, 128], strides = [1, 1]} : vector<32x128xf32> to vector<1x128xf32>
    %444 = vector.broadcast %442 : vector<16x1xf32> to vector<16x128xf32>
    %445 = vector.broadcast %443 : vector<1x128xf32> to vector<16x128xf32>
    %446 = arith.addf %444, %445 : vector<16x128xf32>
    %cst_35 = arith.constant 0.000000e+00 : f32
    %447 = vector.broadcast %cst_35 : f32 to vector<16x128xf32>
    %448 = arith.maximumf %446, %447 : vector<16x128xf32>
    %c29 = arith.constant 29 : index
    %449 = memref.load %arg8[%c29] : memref<66xf32, #tpu.memory_space<smem>>
    %c61 = arith.constant 61 : index
    %450 = memref.load %arg8[%c61] : memref<66xf32, #tpu.memory_space<smem>>
    %451 = vector.broadcast %449 : f32 to vector<16x128xf32>
    %452 = arith.mulf %448, %451 : vector<16x128xf32>
    %453 = arith.addf %438, %452 : vector<16x128xf32>
    %454 = vector.broadcast %450 : f32 to vector<16x128xf32>
    %455 = arith.mulf %448, %454 : vector<16x128xf32>
    %456 = arith.addf %441, %455 : vector<16x128xf32>
    %457 = vector.extract_strided_slice %3 {offsets = [0, 30], sizes = [16, 1], strides = [1, 1]} : vector<16x32xf32> to vector<16x1xf32>
    %458 = vector.extract_strided_slice %4 {offsets = [30, 0], sizes = [1, 128], strides = [1, 1]} : vector<32x128xf32> to vector<1x128xf32>
    %459 = vector.broadcast %457 : vector<16x1xf32> to vector<16x128xf32>
    %460 = vector.broadcast %458 : vector<1x128xf32> to vector<16x128xf32>
    %461 = arith.addf %459, %460 : vector<16x128xf32>
    %cst_36 = arith.constant 0.000000e+00 : f32
    %462 = vector.broadcast %cst_36 : f32 to vector<16x128xf32>
    %463 = arith.maximumf %461, %462 : vector<16x128xf32>
    %c30 = arith.constant 30 : index
    %464 = memref.load %arg8[%c30] : memref<66xf32, #tpu.memory_space<smem>>
    %c62 = arith.constant 62 : index
    %465 = memref.load %arg8[%c62] : memref<66xf32, #tpu.memory_space<smem>>
    %466 = vector.broadcast %464 : f32 to vector<16x128xf32>
    %467 = arith.mulf %463, %466 : vector<16x128xf32>
    %468 = arith.addf %453, %467 : vector<16x128xf32>
    %469 = vector.broadcast %465 : f32 to vector<16x128xf32>
    %470 = arith.mulf %463, %469 : vector<16x128xf32>
    %471 = arith.addf %456, %470 : vector<16x128xf32>
    %472 = vector.extract_strided_slice %3 {offsets = [0, 31], sizes = [16, 1], strides = [1, 1]} : vector<16x32xf32> to vector<16x1xf32>
    %473 = vector.extract_strided_slice %4 {offsets = [31, 0], sizes = [1, 128], strides = [1, 1]} : vector<32x128xf32> to vector<1x128xf32>
    %474 = vector.broadcast %472 : vector<16x1xf32> to vector<16x128xf32>
    %475 = vector.broadcast %473 : vector<1x128xf32> to vector<16x128xf32>
    %476 = arith.addf %474, %475 : vector<16x128xf32>
    %cst_37 = arith.constant 0.000000e+00 : f32
    %477 = vector.broadcast %cst_37 : f32 to vector<16x128xf32>
    %478 = arith.maximumf %476, %477 : vector<16x128xf32>
    %c31 = arith.constant 31 : index
    %479 = memref.load %arg8[%c31] : memref<66xf32, #tpu.memory_space<smem>>
    %c63 = arith.constant 63 : index
    %480 = memref.load %arg8[%c63] : memref<66xf32, #tpu.memory_space<smem>>
    %481 = vector.broadcast %479 : f32 to vector<16x128xf32>
    %482 = arith.mulf %478, %481 : vector<16x128xf32>
    %483 = arith.addf %468, %482 : vector<16x128xf32>
    %484 = vector.broadcast %480 : f32 to vector<16x128xf32>
    %485 = arith.mulf %478, %484 : vector<16x128xf32>
    %486 = arith.addf %471, %485 : vector<16x128xf32>
    %c64 = arith.constant 64 : index
    %487 = memref.load %arg8[%c64] : memref<66xf32, #tpu.memory_space<smem>>
    %488 = vector.broadcast %487 : f32 to vector<16x128xf32>
    %489 = arith.addf %483, %488 : vector<16x128xf32>
    %c65 = arith.constant 65 : index
    %490 = memref.load %arg8[%c65] : memref<66xf32, #tpu.memory_space<smem>>
    %491 = vector.broadcast %490 : f32 to vector<16x128xf32>
    %492 = arith.addf %486, %491 : vector<16x128xf32>
    %cst_38 = arith.constant 5.000000e-01 : f32
    %493 = vector.broadcast %cst_38 : f32 to vector<16x128xf32>
    %494 = arith.mulf %493, %492 : vector<16x128xf32>
    %495 = math.exp %494 : vector<16x128xf32>
    %496 = arith.mulf %495, %495 : vector<16x128xf32>
    %cst_39 = arith.constant 5.000000e-01 : f32
    %497 = vector.broadcast %cst_39 : f32 to vector<16x128xf32>
    %498 = arith.mulf %497, %496 : vector<16x128xf32>
    %499 = arith.subf %489, %498 : vector<16x128xf32>
    %c0_40 = arith.constant 0 : index
    %c0_41 = arith.constant 0 : index
    %500 = vector.load %arg4[%c0_40, %c0_41] : memref<1x128xf32, #tpu.memory_space<vmem>>, vector<1x128xf32>
    %cst_42 = arith.constant 5.000000e-01 : f32
    %501 = vector.broadcast %cst_42 : f32 to vector<16x128xf32>
    %502 = arith.mulf %501, %492 : vector<16x128xf32>
    %cst_43 = arith.constant -0.693147182 : f32
    %503 = vector.broadcast %cst_43 : f32 to vector<16x128xf32>
    %504 = arith.subf %503, %502 : vector<16x128xf32>
    %505 = vector.broadcast %500 : vector<1x128xf32> to vector<16x128xf32>
    %506 = arith.subf %499, %505 : vector<16x128xf32>
    %507 = arith.mulf %506, %506 : vector<16x128xf32>
    %508 = arith.addf %496, %507 : vector<16x128xf32>
    %cst_44 = arith.constant 2.000000e+00 : f32
    %509 = vector.broadcast %cst_44 : f32 to vector<16x128xf32>
    %510 = arith.mulf %508, %509 : vector<16x128xf32>
    %c0_45 = arith.constant 0 : index
    %c0_46 = arith.constant 0 : index
    %511 = vector.load %arg14[%c0_45, %c0_46] : memref<16x1xf32, #tpu.memory_space<vmem>>, vector<16x1xf32>
    %512 = arith.addf %504, %510 : vector<16x128xf32>
    %cst_47 = arith.constant 5.000000e-01 : f32
    %513 = vector.broadcast %cst_47 : f32 to vector<16x128xf32>
    %514 = arith.subf %512, %513 : vector<16x128xf32>
    %cst_48 = arith.constant dense<0.000000e+00> : vector<16xf32>
    %515 = vector.multi_reduction <add>, %514, %cst_48 [1] : vector<16x128xf32> to vector<16xf32>
    %516 = vector.shape_cast %515 : vector<16xf32> to vector<16x1xf32>
    %517 = arith.addf %511, %516 : vector<16x1xf32>
    %c0_49 = arith.constant 0 : index
    %c0_50 = arith.constant 0 : index
    %518 = vector.load %arg14[%c0_49, %c0_50] : memref<16x1xf32, #tpu.memory_space<vmem>>, vector<16x1xf32>
    tpu.vector_store %arg14[%c0_49, %c0_50], %517 {strides = array<i32>} : memref<16x1xf32, #tpu.memory_space<vmem>>, vector<16x1xf32>,
    %c0_51 = arith.constant 0 : index
    %c0_52 = arith.constant 0 : index
    %519 = vector.load %arg5[%c0_51, %c0_52] : memref<16x128xf32, #tpu.memory_space<vmem>>, vector<16x128xf32>
    %520 = arith.mulf %495, %519 : vector<16x128xf32>
    %521 = arith.addf %499, %520 : vector<16x128xf32>
    %522 = math.exp %521 : vector<16x128xf32>
    %cst_53 = arith.constant 1.000000e+00 : f32
    %523 = vector.broadcast %cst_53 : f32 to vector<16x128xf32>
    %524 = arith.mulf %522, %523 : vector<16x128xf32>
    %c0_54 = arith.constant 0 : index
    %c0_55 = arith.constant 0 : index
    %525 = vector.load %arg11[%c0_54, %c0_55] : memref<16x1xf32, #tpu.memory_space<vmem>>, vector<16x1xf32>
    %cst_56 = arith.constant dense<0xFF800000> : vector<16xf32>
    %526 = vector.multi_reduction <maximumf>, %524, %cst_56 [1] : vector<16x128xf32> to vector<16xf32>
    %527 = vector.shape_cast %526 : vector<16xf32> to vector<16x1xf32>
    %528 = arith.maximumf %525, %527 : vector<16x1xf32>
    %529 = arith.subf %525, %528 : vector<16x1xf32>
    %530 = math.exp %529 : vector<16x1xf32>
    %531 = vector.broadcast %528 : vector<16x1xf32> to vector<16x128xf32>
    %532 = arith.subf %524, %531 : vector<16x128xf32>
    %533 = math.exp %532 : vector<16x128xf32>
    %c0_57 = arith.constant 0 : index
    %c0_58 = arith.constant 0 : index
    %534 = vector.load %arg12[%c0_57, %c0_58] : memref<16x1xf32, #tpu.memory_space<vmem>>, vector<16x1xf32>
    %535 = arith.mulf %530, %534 : vector<16x1xf32>
    %cst_59 = arith.constant dense<0.000000e+00> : vector<16xf32>
    %536 = vector.multi_reduction <add>, %533, %cst_59 [1] : vector<16x128xf32> to vector<16xf32>
    %537 = vector.shape_cast %536 : vector<16xf32> to vector<16x1xf32>
    %538 = arith.addf %535, %537 : vector<16x1xf32>
    %c0_60 = arith.constant 0 : index
    %c0_61 = arith.constant 0 : index
    %539 = vector.load %arg12[%c0_60, %c0_61] : memref<16x1xf32, #tpu.memory_space<vmem>>, vector<16x1xf32>
    tpu.vector_store %arg12[%c0_60, %c0_61], %538 {strides = array<i32>} : memref<16x1xf32, #tpu.memory_space<vmem>>, vector<16x1xf32>,
    %c0_62 = arith.constant 0 : index
    %c0_63 = arith.constant 0 : index
    %540 = vector.load %arg13[%c0_62, %c0_63] : memref<16x32xf32, #tpu.memory_space<vmem>>, vector<16x32xf32>
    %541 = vector.broadcast %530 : vector<16x1xf32> to vector<16x32xf32>
    %542 = arith.mulf %541, %540 : vector<16x32xf32>
    %543 = arith.truncf %533 : vector<16x128xf32> to vector<16x128xbf16>
    %c0_64 = arith.constant 0 : index
    %c0_65 = arith.constant 0 : index
    %544 = vector.load %arg6[%c0_64, %c0_65] : memref<128x32xbf16, #tpu.memory_space<vmem>>, vector<128x32xbf16>
    %cst_66 = arith.constant dense<0.000000e+00> : vector<16x32xf32>
    %545 = tpu.matmul %543, %544, %cst_66 {dimension_numbers = #tpu.dot_dimension_numbers<[1], [0], [0], [1], [0, 0, 1, 1], [], []>} : vector<16x128xbf16>, vector<128x32xbf16>, vector<16x32xf32> -> vector<16x32xf32>
    %546 = arith.addf %542, %545 : vector<16x32xf32>
    %c0_67 = arith.constant 0 : index
    %c0_68 = arith.constant 0 : index
    %547 = vector.load %arg13[%c0_67, %c0_68] : memref<16x32xf32, #tpu.memory_space<vmem>>, vector<16x32xf32>
    tpu.vector_store %arg13[%c0_67, %c0_68], %546 {strides = array<i32>} : memref<16x32xf32, #tpu.memory_space<vmem>>, vector<16x32xf32>,
    %c0_69 = arith.constant 0 : index
    %c0_70 = arith.constant 0 : index
    %548 = vector.load %arg11[%c0_69, %c0_70] : memref<16x1xf32, #tpu.memory_space<vmem>>, vector<16x1xf32>
    tpu.vector_store %arg11[%c0_69, %c0_70], %528 {strides = array<i32>} : memref<16x1xf32, #tpu.memory_space<vmem>>, vector<16x1xf32>,
    %c1_i32 = arith.constant 1 : i32
    %549 = arith.cmpi eq, %arg1, %c1_i32 : i32
    %550 = arith.extui %549 : i1 to i32
    %c0_i32_71 = arith.constant 0 : i32
    %551 = arith.cmpi ne, %550, %c0_i32_71 : i32
    scf.if %551 {
      %c0_72 = arith.constant 0 : index
      %c0_73 = arith.constant 0 : index
      %552 = vector.load %arg7[%c0_72, %c0_73] : memref<2x32xf32, #tpu.memory_space<vmem>>, vector<1x32xf32>
      %c1_74 = arith.constant 1 : index
      %c0_75 = arith.constant 0 : index
      %553 = vector.load %arg7[%c1_74, %c0_75] : memref<2x32xf32, #tpu.memory_space<vmem>>, vector<1x32xf32>
      %c0_76 = arith.constant 0 : index
      %c0_77 = arith.constant 0 : index
      %554 = vector.load %arg13[%c0_76, %c0_77] : memref<16x32xf32, #tpu.memory_space<vmem>>, vector<16x32xf32>
      %c0_78 = arith.constant 0 : index
      %c0_79 = arith.constant 0 : index
      %555 = vector.load %arg12[%c0_78, %c0_79] : memref<16x1xf32, #tpu.memory_space<vmem>>, vector<16x1xf32>
      %556 = tpu.reciprocal %555 {approx = true} : vector<16x1xf32> -> vector<16x1xf32>
      %557 = vector.broadcast %556 : vector<16x1xf32> to vector<16x32xf32>
      %558 = arith.mulf %554, %557 : vector<16x32xf32>
      %cst_80 = arith.constant dense<0.000000e+00> : vector<16xf32>
      %559 = vector.multi_reduction <add>, %558, %cst_80 [1] : vector<16x32xf32> to vector<16xf32>
      %560 = vector.shape_cast %559 : vector<16xf32> to vector<16x1xf32>
      %cst_81 = arith.constant 3.200000e+01 : f32
      %561 = vector.broadcast %cst_81 : f32 to vector<16x1xf32>
      %562 = arith.divf %560, %561 : vector<16x1xf32>
      %563 = vector.broadcast %562 : vector<16x1xf32> to vector<16x32xf32>
      %564 = arith.subf %558, %563 : vector<16x32xf32>
      %565 = arith.mulf %564, %564 : vector<16x32xf32>
      %cst_82 = arith.constant dense<0.000000e+00> : vector<16xf32>
      %566 = vector.multi_reduction <add>, %565, %cst_82 [1] : vector<16x32xf32> to vector<16xf32>
      %567 = vector.shape_cast %566 : vector<16xf32> to vector<16x1xf32>
      %cst_83 = arith.constant 3.200000e+01 : f32
      %568 = vector.broadcast %cst_83 : f32 to vector<16x1xf32>
      %569 = arith.divf %567, %568 : vector<16x1xf32>
      %cst_84 = arith.constant 9.99999974E-6 : f32
      %570 = vector.broadcast %cst_84 : f32 to vector<16x1xf32>
      %571 = arith.addf %569, %570 : vector<16x1xf32>
      %572 = math.rsqrt %571 : vector<16x1xf32>
      %573 = vector.broadcast %572 : vector<16x1xf32> to vector<16x32xf32>
      %574 = arith.mulf %564, %573 : vector<16x32xf32>
      %575 = vector.broadcast %552 : vector<1x32xf32> to vector<16x32xf32>
      %576 = arith.mulf %574, %575 : vector<16x32xf32>
      %577 = vector.broadcast %553 : vector<1x32xf32> to vector<16x32xf32>
      %578 = arith.addf %576, %577 : vector<16x32xf32>
      %c0_85 = arith.constant 0 : index
      %c0_86 = arith.constant 0 : index
      %579 = vector.load %arg9[%c0_85, %c0_86] : memref<16x32xf32, #tpu.memory_space<vmem>>, vector<16x32xf32>
      tpu.vector_store %arg9[%c0_85, %c0_86], %578 {strides = array<i32>} : memref<16x32xf32, #tpu.memory_space<vmem>>, vector<16x32xf32>,
      %c0_87 = arith.constant 0 : index
      %c0_88 = arith.constant 0 : index
      %580 = vector.load %arg14[%c0_87, %c0_88] : memref<16x1xf32, #tpu.memory_space<vmem>>, vector<16x1xf32>
      %c0_89 = arith.constant 0 : index
      %c0_90 = arith.constant 0 : index
      %581 = vector.load %arg10[%c0_89, %c0_90] : memref<16x1xf32, #tpu.memory_space<vmem>>, vector<16x1xf32>
      tpu.vector_store %arg10[%c0_89, %c0_90], %580 {strides = array<i32>} : memref<16x1xf32, #tpu.memory_space<vmem>>, vector<16x1xf32>,
    } else {
    }
    return
  }
  func.func @transform_0(%arg0: i32, %arg1: i32) -> (i32, i32) {
    %c0_i32 = arith.constant 0 : i32
    %c0_i32_0 = arith.constant 0 : i32
    return %arg0, %c0_i32 : i32, i32
  }
  func.func @transform_1(%arg0: i32, %arg1: i32) -> (i32, i32) {
    %c0_i32 = arith.constant 0 : i32
    %c0_i32_0 = arith.constant 0 : i32
    return %c0_i32, %arg1 : i32, i32
  }
  func.func @transform_2(%arg0: i32, %arg1: i32) -> (i32, i32) {
    %c0_i32 = arith.constant 0 : i32
    %c0_i32_0 = arith.constant 0 : i32
    return %c0_i32, %arg1 : i32, i32
  }
  func.func @transform_3(%arg0: i32, %arg1: i32) -> (i32, i32) {
    %c0_i32 = arith.constant 0 : i32
    return %arg0, %arg1 : i32, i32
  }
  func.func @transform_4(%arg0: i32, %arg1: i32) -> (i32, i32) {
    %c0_i32 = arith.constant 0 : i32
    %c0_i32_0 = arith.constant 0 : i32
    return %arg1, %c0_i32 : i32, i32
  }
  func.func @transform_5(%arg0: i32, %arg1: i32) -> (i32, i32) {
    %c0_i32 = arith.constant 0 : i32
    %c0_i32_0 = arith.constant 0 : i32
    %c0_i32_1 = arith.constant 0 : i32
    return %c0_i32, %c0_i32_0 : i32, i32
  }
  func.func @transform_6(%arg0: i32, %arg1: i32) -> i32 {
    %c0_i32 = arith.constant 0 : i32
    %c0_i32_0 = arith.constant 0 : i32
    return %c0_i32 : i32
  }
  func.func @transform_7(%arg0: i32, %arg1: i32) -> (i32, i32) {
    %c0_i32 = arith.constant 0 : i32
    %c0_i32_0 = arith.constant 0 : i32
    return %arg0, %c0_i32 : i32, i32
  }
  func.func @transform_8(%arg0: i32, %arg1: i32) -> (i32, i32) {
    %c0_i32 = arith.constant 0 : i32
    %c0_i32_0 = arith.constant 0 : i32
    return %arg0, %c0_i32 : i32, i32
  }
}

</mosaic_0001>

<llo_original>
// kernel: tpu_custom_call.1
$region0: #{tpu_custom_call.1}
  #allocation0 [shape = 'u32[]', space=smem, size = 0x4, offset = 0x4, fixed_abs, tag = 'smem constant byte address 0x4 - core index']
  #allocation1 [shape = 'u32[72,128]{1,0:T(1,128)}', space=vmem, size = 0x9000, scoped, tag = 'internal scratch']
  #allocation2 [shape = 'f32[16,1]{1,0:T(8,128)}', space=vmem, size = 0x2000, scoped, tag = 'scratch operand']
  #allocation3 [shape = 'f32[16,1]{1,0:T(8,128)}', space=vmem, size = 0x2000, scoped, tag = 'scratch operand']
  #allocation4 [shape = 'f32[16,32]{1,0:T(8,128)}', space=vmem, size = 0x2000, scoped, tag = 'scratch operand']
  #allocation5 [shape = 'f32[16,1]{1,0:T(8,128)}', space=vmem, size = 0x2000, scoped, tag = 'scratch operand']
  %s0 = inlined_call_operand.vmem [shape: f32[32,32], index: 0, kind: input, shape index: {}]
  %s1 = inlined_call_operand.vmem [shape: f32[32,256], index: 1, kind: input, shape index: {}]
  %s2 = inlined_call_operand.hbm [shape: f32[1,256], index: 2, kind: input, shape index: {}]
  %s3 = inlined_call_operand.vmem [shape: f32[32,256], index: 3, kind: input, shape index: {}]
  %s4 = inlined_call_operand.vmem [shape: bf16[256,32], index: 4, kind: input, shape index: {}]
  %s5 = inlined_call_operand.vmem [shape: f32[2,32], index: 5, kind: input, shape index: {}]
  %s6 = inlined_call_operand.vmem [shape: f32[66], index: 6, kind: input, shape index: {}]
  %s7 = inlined_call_operand.hbm [shape: f32[32,32], index: 7, kind: output, shape index: {0}]
  %s8 = inlined_call_operand.vmem [shape: f32[32,1], index: 8, kind: output, shape index: {1}]
  %9 = xla_tuple %s7, %s8
  %s10 = sld [smem:[#allocation0]]
  $region161: #{tpu_custom_call.1} parent=0
    _
  %s12 = ssub.s32 1, %s10
  %s13 = scalar_select 0, %s12, %s10
  $region1: #{tpu_custom_call.1} parent=0
    #allocation6 [shape = 'u8[32768]{0}', space=vmem, size = 0x8000, scoped, tag = 'input window, operand 1']
    #allocation7 [shape = 'u8[1024]{0}', space=vmem, size = 0x400, scoped, tag = 'input window, operand 2']
    #allocation8 [shape = 's32[2]{0}', space=sflag, size = 0x8, scoped, tag = 'scoped memory for tpu_custom_call.1']
    #allocation9 [shape = 's32[2]{0}', space=sflag, size = 0x8, scoped, tag = 'scoped memory for tpu_custom_call.1']
    #allocation10 [shape = 's32[2]{0}', space=sflag, size = 0x8, scoped, tag = 'scoped memory for tpu_custom_call.1']
    #allocation11 [shape = 'u8[16384]{0}', space=vmem, size = 0x4000, scoped, tag = 'input window, operand 3']
    #allocation12 [shape = 'u8[512]{0}', space=smem, size = 0x200, scoped, tag = 'input window, operand 6, single buffered']
    #allocation13 [shape = 'u8[16384]{0}', space=vmem, size = 0x4000, scoped, tag = 'output window, operand 0']
    %14 = vsyncpa [#allocation8], 0
    %s15 = scalar_lea.sflag [#allocation8], 1
    %16 = vsyncpa %s15, 0
    %17 = vsyncpa [#allocation10], 0
    %18 = vsyncpa [#allocation9], 0
    %s19 = scalar_lea.sflag [#allocation9], 1
    %20 = vsyncpa %s19, 0
    loop: start=0, step=1, limit=6
    $region2: #{tpu_custom_call.1} parent=1 // loop_pre_header
      _
    $region3: #{tpu_custom_call.1} parent=1 // loop_header
      %s22 = sphi 0, %s26
      %p23 = scmp.ge.s32.totalorder %s22, 6
      %s29 = sphi 0, %s41
      %s30 = sphi 0, %s37
      %s31 = sphi 0, %s29
      %s32 = sphi 0, %s30
      %s33 = sphi 0, %s31
      %s34 = sphi 0, %s32
      %s44 = sphi 0, %s46
      %s47 = sphi 0, %s44
      %s48 = sphi 0, %s47
      %s64 = sphi 0, %s48
      %s70 = sphi 0, %s72
      %s73 = sphi 0, %s70
      %s74 = sphi 0, %s73
      %s90 = sphi 0, %s74
      %s96 = sphi 0, %s98
      %s99 = sphi 0, %s96
      %s100 = sphi 0, %s99
      %s116 = sphi 0, %s100
      %s124 = sphi 0, %s126
      %s127 = sphi 0, %s124
      %s128 = sphi 0, %s127
      %s144 = sphi 0, %s128
      %s150 = sphi 0, %s152
      %s153 = sphi 0, %s150
      %s154 = sphi 0, %s153
      %s170 = sphi 0, %s154
      %s174 = sphi 0, %s174
      %s176 = sphi 0, %s174
      %s177 = sphi 0, %s176
      %s191 = sphi 0, %s177
      %s195 = sphi 0, %s195
      %s197 = sphi 0, %s195
      %s198 = sphi 0, %s197
      %s212 = sphi 0, %s198
      %s218 = sphi 0, %s220
      %s221 = sphi 0, %s218
      %s222 = sphi 0, %s221
      %s238 = sphi 0, %s222
      %s244 = sphi 0, %s246
      %s247 = sphi 0, %s244
      %s248 = sphi 0, %s247
      %s264 = sphi 0, %s248
    $region4: #{tpu_custom_call.1} parent=1 // loop_header_branch
      %25 = sbr.rel (%p23) target = $region8
    $region5: #{tpu_custom_call.1} parent=1 // loop_body
      %s27 = ssub.s32 %s22, 1
      %s28 = ssub.s32 %s22, 2
      %s35 = sadd.s32 1, %s30
      %p36 = scmp.ge.s32.totalorder %s35, 2
      %s37 = scalar_select %p36, 0, %s35
      %s38 = sadd.s32 1, %s29
      %s39 = scalar_select %p36, %s38, %s29
      %p40 = scmp.ge.s32.totalorder %s39, 2
      %s41 = scalar_select %p40, 0, %s39
      %s42 = ssub.s32 %s29, %s41
      %p43 = scmp.eq.s32.totalorder %s42, 0
      %s45 = sadd.s32 %s44, 1
      %s46 = scalar_select %p43, %s44, %s45
      %p49 = pneg %p43
      %p50 = scmp.eq.s32.totalorder %s22, 3
      %p51 = por %p49, %p50
      %p52 = scmp.ne.s32.totalorder %s44, %s47
      %p53 = scmp.eq.s32.totalorder %s22, 0
      %p54 = por %p52, %p53
      %p55 = scmp.ne.s32.totalorder %s44, %s47
      %p56 = scmp.eq.s32.totalorder %s27, 3
      %p57 = por %p55, %p56
      %p58 = scmp.ne.s32.totalorder %s47, %s48
      %p59 = scmp.eq.s32.totalorder %s27, 0
      %p60 = por %p58, %p59
      %p61 = scmp.ne.s32.totalorder %s47, %s48
      %p62 = scmp.eq.s32.totalorder %s28, 3
      %p63 = por %p61, %p62
      %p65 = scmp.ne.s32.totalorder %s48, %s64
      %p66 = scmp.eq.s32.totalorder %s28, 0
      %p67 = por %p65, %p66
      %s68 = ssub.s32 %s30, %s37
      %p69 = scmp.eq.s32.totalorder %s68, 0
      %s71 = sadd.s32 %s70, 1
      %s72 = scalar_select %p69, %s70, %s71
      %p75 = pneg %p69
      %p76 = scmp.eq.s32.totalorder %s22, 3
      %p77 = por %p75, %p76
      %p78 = scmp.ne.s32.totalorder %s70, %s73
      %p79 = scmp.eq.s32.totalorder %s22, 0
      %p80 = por %p78, %p79
      %p81 = scmp.ne.s32.totalorder %s70, %s73
      %p82 = scmp.eq.s32.totalorder %s27, 3
      %p83 = por %p81, %p82
      %p84 = scmp.ne.s32.totalorder %s73, %s74
      %p85 = scmp.eq.s32.totalorder %s27, 0
      %p86 = por %p84, %p85
      %p87 = scmp.ne.s32.totalorder %s73, %s74
      %p88 = scmp.eq.s32.totalorder %s28, 3
      %p89 = por %p87, %p88
      %p91 = scmp.ne.s32.totalorder %s74, %s90
      %p92 = scmp.eq.s32.totalorder %s28, 0
      %p93 = por %p91, %p92
      %s94 = ssub.s32 %s30, %s37
      %p95 = scmp.eq.s32.totalorder %s94, 0
      %s97 = sadd.s32 %s96, 1
      %s98 = scalar_select %p95, %s96, %s97
      %p101 = pneg %p95
      %p102 = scmp.eq.s32.totalorder %s22, 3
      %p103 = por %p101, %p102
      %p104 = scmp.ne.s32.totalorder %s96, %s99
      %p105 = scmp.eq.s32.totalorder %s22, 0
      %p106 = por %p104, %p105
      %p107 = scmp.ne.s32.totalorder %s96, %s99
      %p108 = scmp.eq.s32.totalorder %s27, 3
      %p109 = por %p107, %p108
      %p110 = scmp.ne.s32.totalorder %s99, %s100
      %p111 = scmp.eq.s32.totalorder %s27, 0
      %p112 = por %p110, %p111
      %p113 = scmp.ne.s32.totalorder %s99, %s100
      %p114 = scmp.eq.s32.totalorder %s28, 3
      %p115 = por %p113, %p114
      %p117 = scmp.ne.s32.totalorder %s100, %s116
      %p118 = scmp.eq.s32.totalorder %s28, 0
      %p119 = por %p117, %p118
      %s120 = ssub.s32 %s29, %s41
      %s121 = ssub.s32 %s30, %s37
      %s122 = sor.u32 %s120, %s121
      %p123 = scmp.eq.s32.totalorder %s122, 0
      %s125 = sadd.s32 %s124, 1
      %s126 = scalar_select %p123, %s124, %s125
      %p129 = pneg %p123
      %p130 = scmp.eq.s32.totalorder %s22, 3
      %p131 = por %p129, %p130
      %p132 = scmp.ne.s32.totalorder %s124, %s127
      %p133 = scmp.eq.s32.totalorder %s22, 0
      %p134 = por %p132, %p133
      %p135 = scmp.ne.s32.totalorder %s124, %s127
      %p136 = scmp.eq.s32.totalorder %s27, 3
      %p137 = por %p135, %p136
      %p138 = scmp.ne.s32.totalorder %s127, %s128
      %p139 = scmp.eq.s32.totalorder %s27, 0
      %p140 = por %p138, %p139
      %p141 = scmp.ne.s32.totalorder %s127, %s128
      %p142 = scmp.eq.s32.totalorder %s28, 3
      %p143 = por %p141, %p142
      %p145 = scmp.ne.s32.totalorder %s128, %s144
      %p146 = scmp.eq.s32.totalorder %s28, 0
      %p147 = por %p145, %p146
      %s148 = ssub.s32 %s30, %s37
      %p149 = scmp.eq.s32.totalorder %s148, 0
      %s151 = sadd.s32 %s150, 1
      %s152 = scalar_select %p149, %s150, %s151
      %p155 = pneg %p149
      %p156 = scmp.eq.s32.totalorder %s22, 3
      %p157 = por %p155, %p156
      %p158 = scmp.ne.s32.totalorder %s150, %s153
      %p159 = scmp.eq.s32.totalorder %s22, 0
      %p160 = por %p158, %p159
      %p161 = scmp.ne.s32.totalorder %s150, %s153
      %p162 = scmp.eq.s32.totalorder %s27, 3
      %p163 = por %p161, %p162
      %p164 = scmp.ne.s32.totalorder %s153, %s154
      %p165 = scmp.eq.s32.totalorder %s27, 0
      %p166 = por %p164, %p165
      %p167 = scmp.ne.s32.totalorder %s153, %s154
      %p168 = scmp.eq.s32.totalorder %s28, 3
      %p169 = por %p167, %p168
      %p171 = scmp.ne.s32.totalorder %s154, %s170
      %p172 = scmp.eq.s32.totalorder %s28, 0
      %p173 = por %p171, %p172
      %s175 = sadd.s32 %s174, 1
      %p178 = scmp.eq.s32.totalorder %s22, 3
      %p179 = scmp.ne.s32.totalorder %s174, %s176
      %p180 = scmp.eq.s32.totalorder %s22, 0
      %p181 = por %p179, %p180
      %p182 = scmp.ne.s32.totalorder %s174, %s176
      %p183 = scmp.eq.s32.totalorder %s27, 3
      %p184 = por %p182, %p183
      %p185 = scmp.ne.s32.totalorder %s176, %s177
      %p186 = scmp.eq.s32.totalorder %s27, 0
      %p187 = por %p185, %p186
      %p188 = scmp.ne.s32.totalorder %s176, %s177
      %p189 = scmp.eq.s32.totalorder %s28, 3
      %p190 = por %p188, %p189
      %p192 = scmp.ne.s32.totalorder %s177, %s191
      %p193 = scmp.eq.s32.totalorder %s28, 0
      %p194 = por %p192, %p193
      %s196 = sadd.s32 %s195, 1
      %p199 = scmp.eq.s32.totalorder %s22, 3
      %p200 = scmp.ne.s32.totalorder %s195, %s197
      %p201 = scmp.eq.s32.totalorder %s22, 0
      %p202 = por %p200, %p201
      %p203 = scmp.ne.s32.totalorder %s195, %s197
      %p204 = scmp.eq.s32.totalorder %s27, 3
      %p205 = por %p203, %p204
      %p206 = scmp.ne.s32.totalorder %s197, %s198
      %p207 = scmp.eq.s32.totalorder %s27, 0
      %p208 = por %p206, %p207
      %p209 = scmp.ne.s32.totalorder %s197, %s198
      %p210 = scmp.eq.s32.totalorder %s28, 3
      %p211 = por %p209, %p210
      %p213 = scmp.ne.s32.totalorder %s198, %s212
      %p214 = scmp.eq.s32.totalorder %s28, 0
      %p215 = por %p213, %p214
      %s216 = ssub.s32 %s29, %s41
      %p217 = scmp.eq.s32.totalorder %s216, 0
      %s219 = sadd.s32 %s218, 1
      %s220 = scalar_select %p217, %s218, %s219
      %p223 = pneg %p217
      %p224 = scmp.eq.s32.totalorder %s22, 3
      %p225 = por %p223, %p224
      %p226 = scmp.ne.s32.totalorder %s218, %s221
      %p227 = scmp.eq.s32.totalorder %s22, 0
      %p228 = por %p226, %p227
      %p229 = scmp.ne.s32.totalorder %s218, %s221
      %p230 = scmp.eq.s32.totalorder %s27, 3
      %p231 = por %p229, %p230
      %p232 = scmp.ne.s32.totalorder %s221, %s222
      %p233 = scmp.eq.s32.totalorder %s27, 0
      %p234 = por %p232, %p233
      %p235 = scmp.ne.s32.totalorder %s221, %s222
      %p236 = scmp.eq.s32.totalorder %s28, 3
      %p237 = por %p235, %p236
      %p239 = scmp.ne.s32.totalorder %s222, %s238
      %p240 = scmp.eq.s32.totalorder %s28, 0
      %p241 = por %p239, %p240
      %s242 = ssub.s32 %s29, %s41
      %p243 = scmp.eq.s32.totalorder %s242, 0
      %s245 = sadd.s32 %s244, 1
      %s246 = scalar_select %p243, %s244, %s245
      %p249 = pneg %p243
      %p250 = scmp.eq.s32.totalorder %s22, 3
      %p251 = por %p249, %p250
      %p252 = scmp.ne.s32.totalorder %s244, %s247
      %p253 = scmp.eq.s32.totalorder %s22, 0
      %p254 = por %p252, %p253
      %p255 = scmp.ne.s32.totalorder %s244, %s247
      %p256 = scmp.eq.s32.totalorder %s27, 3
      %p257 = por %p255, %p256
      %p258 = scmp.ne.s32.totalorder %s247, %s248
      %p259 = scmp.eq.s32.totalorder %s27, 0
      %p260 = por %p258, %p259
      %p261 = scmp.ne.s32.totalorder %s247, %s248
      %p262 = scmp.eq.s32.totalorder %s28, 3
      %p263 = por %p261, %p262
      %p265 = scmp.ne.s32.totalorder %s248, %s264
      %p266 = scmp.eq.s32.totalorder %s28, 0
      %p267 = por %p265, %p266
      %p268 = scmp.le.s32.totalorder 1, %s22
      %p269 = scmp.lt.s32.totalorder %s22, 5
      %p270 = pnand %p268, %p269
      %p271 = pneg %p270
      // Predicated region
      $region9: #{tpu_custom_call.1} parent=5 // pred_check
        _
      $region10: #{tpu_custom_call.1} parent=5 // pred_check_branch
        %273 = sbr.rel (%p270) target = $region12
      $region11: #{tpu_custom_call.1} parent=5 // pred_region
        %s274 = ssub.s32 %s22, 1
        // Predicated region
        $region13: #{tpu_custom_call.1} parent=11 // pred_check
          %p275 = pneg %p187
        $region14: #{tpu_custom_call.1} parent=11 // pred_check_branch
          %277 = sbr.rel (%p275) target = $region16
        $region15: #{tpu_custom_call.1} parent=11 // pred_region
          _
        $region16: #{tpu_custom_call.1} parent=11 // pred_fallthru
          _
        // Predicated region
        $region17: #{tpu_custom_call.1} parent=11 // pred_check
          %p278 = pneg %p208
        $region18: #{tpu_custom_call.1} parent=11 // pred_check_branch
          %280 = sbr.rel (%p278) target = $region20
        $region19: #{tpu_custom_call.1} parent=11 // pred_region
          %282 = vsyncadd [#allocation10], 0
          %s284 = sshll.u32 %s6, 4
          %s285 = int_to_ptr.vmem [resolvable:$true] %s284
          %287 = dma.vmem_to_smem %s285, 16, [#allocation12], [#allocation10]
        $region20: #{tpu_custom_call.1} parent=11 // pred_fallthru
          _
      $region12: #{tpu_custom_call.1} parent=5 // pred_fallthru
        _
      %p288 = scmp.lt.s32.totalorder %s22, 4
      // Predicated region
      $region21: #{tpu_custom_call.1} parent=5 // pred_check
        %p289 = pneg %p288
      $region22: #{tpu_custom_call.1} parent=5 // pred_check_branch
        %291 = sbr.rel (%p289) target = $region24
      $region23: #{tpu_custom_call.1} parent=5 // pred_region
        // Predicated region
        $region25: #{tpu_custom_call.1} parent=23 // pred_check
          %p292 = pneg %p54
        $region26: #{tpu_custom_call.1} parent=23 // pred_check_branch
          %294 = sbr.rel (%p292) target = $region28
        $region27: #{tpu_custom_call.1} parent=23 // pred_region
          %s295 = smul.u32 2, %s29
          %p296 = scmp.lt.s32.totalorder %s295, 3
          %s297 = scalar_select %p296, %s295, 3
          %s298 = smul.addr %s297, 8
          %s299 = scalar_lea.vmem %s0, %s298
          %s300 = smul.u32 2, %s29
        $region28: #{tpu_custom_call.1} parent=23 // pred_fallthru
          _
        // Predicated region
        $region29: #{tpu_custom_call.1} parent=23 // pred_check
          %p301 = pneg %p80
        $region30: #{tpu_custom_call.1} parent=23 // pred_check_branch
          %303 = sbr.rel (%p301) target = $region32
        $region31: #{tpu_custom_call.1} parent=23 // pred_region
          %s304 = sand.u32 %s70, 1
          %s305 = sand.u32 %s70, 1
          %s306 = smul.addr %s305, 32
          %s307 = scalar_lea.vmem [#allocation6], %s306
          %s308 = smul.addr %s30, 8
          %s309 = scalar_lea.vmem %s1, %s308
          // Predicated region
          $region33: #{tpu_custom_call.1} parent=31 // pred_check
            _
          $region34: #{tpu_custom_call.1} parent=31 // pred_check_branch
            %311 = sbr.rel (0) target = $region36
          $region35: #{tpu_custom_call.1} parent=31 // pred_region
            // Predicated region
            $region37: #{tpu_custom_call.1} parent=35 // pred_check
              _
            $region38: #{tpu_custom_call.1} parent=35 // pred_check_branch
              %313 = sbr.rel (0) target = $region40
            $region39: #{tpu_custom_call.1} parent=35 // pred_region
              // Predicated region
              $region52: #{tpu_custom_call.1} parent=39 // pred_check
                _
              $region53: #{tpu_custom_call.1} parent=39 // pred_check_branch
                %335 = sbr.rel (0) target = $region55
              $region54: #{tpu_custom_call.1} parent=39 // pred_region
                loop: start=0, step=1, limit=1
                $region56: #{tpu_custom_call.1} parent=54 // loop_pre_header
                  _
                $region57: #{tpu_custom_call.1} parent=54 // loop_header
                  %s337 = sphi 0, %s341
                  %p338 = scmp.ge.s32.totalorder %s337, 1
                  %s342 = sphi %s309, %s309
                  %s343 = sphi %s307, %s307
                $region58: #{tpu_custom_call.1} parent=54 // loop_header_branch
                  %340 = sbr.rel (%p338) target = $region62
                $region59: #{tpu_custom_call.1} parent=54 // loop_body
                  %v344 = vld [vmem:[%s342] sm:$0xff]
                  %345 = vst [vmem:[%s343] sm:$0xff] %v344
                  %v346 = vld [vmem:[%s342 + $0x10] sm:$0xff]
                  %347 = vst [vmem:[%s343 + $0x8] sm:$0xff] %v346
                  %v348 = vld [vmem:[%s342 + $0x20] sm:$0xff]
                  %349 = vst [vmem:[%s343 + $0x10] sm:$0xff] %v348
                  %v350 = vld [vmem:[%s342 + $0x30] sm:$0xff]
                  %351 = vst [vmem:[%s343 + $0x18] sm:$0xff] %v350
                $region60: #{tpu_custom_call.1} parent=54 // loop_footer
                  %s341 = sadd.s32 1, %s337
                $region61: #{tpu_custom_call.1} parent=54 // loop_footer_branch
                  %336 = sbr.rel target = $region57
                $region62: #{tpu_custom_call.1} parent=54 // loop_exit
                  _
              $region55: #{tpu_custom_call.1} parent=39 // pred_fallthru
                _
              // Predicated region
              $region63: #{tpu_custom_call.1} parent=39 // pred_check
                _
              $region64: #{tpu_custom_call.1} parent=39 // pred_check_branch
                %353 = sbr.rel target = $region66
              $region65: #{tpu_custom_call.1} parent=39 // pred_region
                _
              $region66: #{tpu_custom_call.1} parent=39 // pred_fallthru
                _
            $region40: #{tpu_custom_call.1} parent=35 // pred_fallthru
              _
            // Predicated region
            $region41: #{tpu_custom_call.1} parent=35 // pred_check
              _
            $region42: #{tpu_custom_call.1} parent=35 // pred_check_branch
              %315 = sbr.rel target = $region44
            $region43: #{tpu_custom_call.1} parent=35 // pred_region
              %s317 = ssub.s32 256, 1
              loop: start=0, step=1, limit=1
              $region45: #{tpu_custom_call.1} parent=43 // loop_pre_header
                _
              $region46: #{tpu_custom_call.1} parent=43 // loop_header
                %s319 = sphi 0, %s323
                %p320 = scmp.ge.s32.totalorder %s319, 1
                %s324 = sphi %s309, %s309
                %s325 = sphi %s307, %s307
              $region47: #{tpu_custom_call.1} parent=43 // loop_header_branch
                %322 = sbr.rel (%p320) target = $region51
              $region48: #{tpu_custom_call.1} parent=43 // loop_body
                %v326 = vld [vmem:[%s324] sm:%s317]
                %327 = vst [vmem:[%s325] sm:%s317] %v326
                %v328 = vld [vmem:[%s324 + $0x10] sm:%s317]
                %329 = vst [vmem:[%s325 + $0x8] sm:%s317] %v328
                %v330 = vld [vmem:[%s324 + $0x20] sm:%s317]
                %331 = vst [vmem:[%s325 + $0x10] sm:%s317] %v330
                %v332 = vld [vmem:[%s324 + $0x30] sm:%s317]
                %333 = vst [vmem:[%s325 + $0x18] sm:%s317] %v332
              $region49: #{tpu_custom_call.1} parent=43 // loop_footer
                %s323 = sadd.s32 1, %s319
              $region50: #{tpu_custom_call.1} parent=43 // loop_footer_branch
                %318 = sbr.rel target = $region46
              $region51: #{tpu_custom_call.1} parent=43 // loop_exit
                _
            $region44: #{tpu_custom_call.1} parent=35 // pred_fallthru
              _
          $region36: #{tpu_custom_call.1} parent=31 // pred_fallthru
            _
          %354 = vnop
        $region32: #{tpu_custom_call.1} parent=23 // pred_fallthru
          _
        // Predicated region
        $region67: #{tpu_custom_call.1} parent=23 // pred_check
          %p355 = pneg %p106
        $region68: #{tpu_custom_call.1} parent=23 // pred_check_branch
          %357 = sbr.rel (%p355) target = $region70
        $region69: #{tpu_custom_call.1} parent=23 // pred_region
          %s358 = sand.u32 %s96, 1
          %s359 = scalar_lea.sflag [#allocation8], %s358
          %s360 = sand.u32 %s96, 1
          %s361 = scalar_lea.vmem [#allocation7], %s360
          %363 = vsyncadd %s359, 0
          %s364 = scalar_lea.hbm %s2, %s30
          %s366 = sshll.u32 %s364, 4
          %s367 = int_to_ptr.hbm [resolvable:$true] %s366
          %s368 = sshll.u32 %s361, 4
          %s369 = int_to_ptr.vmem [resolvable:$true] %s368
          %371 = dma.hbm_to_vmem [thread:$0]  %s367, 16, %s369, %s359
        $region70: #{tpu_custom_call.1} parent=23 // pred_fallthru
          _
        // Predicated region
        $region71: #{tpu_custom_call.1} parent=23 // pred_check
          %p372 = pneg %p134
        $region72: #{tpu_custom_call.1} parent=23 // pred_check_branch
          %374 = sbr.rel (%p372) target = $region74
        $region73: #{tpu_custom_call.1} parent=23 // pred_region
          %s375 = sand.u32 %s124, 1
          %s376 = sand.u32 %s124, 1
          %s377 = smul.addr %s376, 16
          %s378 = scalar_lea.vmem [#allocation11], %s377
          %s379 = smul.u32 2, %s29
          %s380 = smul.addr %s379, 2
          %s381 = sadd.s32 %s30, %s380
          %s382 = smul.addr %s381, 8
          %s383 = scalar_lea.vmem %s3, %s382
          // Predicated region
          $region75: #{tpu_custom_call.1} parent=73 // pred_check
            _
          $region76: #{tpu_custom_call.1} parent=73 // pred_check_branch
            %385 = sbr.rel (0) target = $region78
          $region77: #{tpu_custom_call.1} parent=73 // pred_region
            // Predicated region
            $region79: #{tpu_custom_call.1} parent=77 // pred_check
              _
            $region80: #{tpu_custom_call.1} parent=77 // pred_check_branch
              %387 = sbr.rel (0) target = $region82
            $region81: #{tpu_custom_call.1} parent=77 // pred_region
              // Predicated region
              $region94: #{tpu_custom_call.1} parent=81 // pred_check
                _
              $region95: #{tpu_custom_call.1} parent=81 // pred_check_branch
                %405 = sbr.rel (0) target = $region97
              $region96: #{tpu_custom_call.1} parent=81 // pred_region
                loop: start=0, step=1, limit=1
                $region98: #{tpu_custom_call.1} parent=96 // loop_pre_header
                  _
                $region99: #{tpu_custom_call.1} parent=96 // loop_header
                  %s407 = sphi 0, %s411
                  %p408 = scmp.ge.s32.totalorder %s407, 1
                  %s412 = sphi %s383, %s383
                  %s413 = sphi %s378, %s378
                $region100: #{tpu_custom_call.1} parent=96 // loop_header_branch
                  %410 = sbr.rel (%p408) target = $region104
                $region101: #{tpu_custom_call.1} parent=96 // loop_body
                  %v414 = vld [vmem:[%s412] sm:$0xff]
                  %415 = vst [vmem:[%s413] sm:$0xff] %v414
                  %v416 = vld [vmem:[%s412 + $0x10] sm:$0xff]
                  %417 = vst [vmem:[%s413 + $0x8] sm:$0xff] %v416
                $region102: #{tpu_custom_call.1} parent=96 // loop_footer
                  %s411 = sadd.s32 1, %s407
                $region103: #{tpu_custom_call.1} parent=96 // loop_footer_branch
                  %406 = sbr.rel target = $region99
                $region104: #{tpu_custom_call.1} parent=96 // loop_exit
                  _
              $region97: #{tpu_custom_call.1} parent=81 // pred_fallthru
                _
              // Predicated region
              $region105: #{tpu_custom_call.1} parent=81 // pred_check
                _
              $region106: #{tpu_custom_call.1} parent=81 // pred_check_branch
                %419 = sbr.rel target = $region108
              $region107: #{tpu_custom_call.1} parent=81 // pred_region
                _
              $region108: #{tpu_custom_call.1} parent=81 // pred_fallthru
                _
            $region82: #{tpu_custom_call.1} parent=77 // pred_fallthru
              _
            // Predicated region
            $region83: #{tpu_custom_call.1} parent=77 // pred_check
              _
            $region84: #{tpu_custom_call.1} parent=77 // pred_check_branch
              %389 = sbr.rel target = $region86
            $region85: #{tpu_custom_call.1} parent=77 // pred_region
              %s391 = ssub.s32 256, 1
              loop: start=0, step=1, limit=1
              $region87: #{tpu_custom_call.1} parent=85 // loop_pre_header
                _
              $region88: #{tpu_custom_call.1} parent=85 // loop_header
                %s393 = sphi 0, %s397
                %p394 = scmp.ge.s32.totalorder %s393, 1
                %s398 = sphi %s383, %s383
                %s399 = sphi %s378, %s378
              $region89: #{tpu_custom_call.1} parent=85 // loop_header_branch
                %396 = sbr.rel (%p394) target = $region93
              $region90: #{tpu_custom_call.1} parent=85 // loop_body
                %v400 = vld [vmem:[%s398] sm:%s391]
                %401 = vst [vmem:[%s399] sm:%s391] %v400
                %v402 = vld [vmem:[%s398 + $0x10] sm:%s391]
                %403 = vst [vmem:[%s399 + $0x8] sm:%s391] %v402
              $region91: #{tpu_custom_call.1} parent=85 // loop_footer
                %s397 = sadd.s32 1, %s393
              $region92: #{tpu_custom_call.1} parent=85 // loop_footer_branch
                %392 = sbr.rel target = $region88
              $region93: #{tpu_custom_call.1} parent=85 // loop_exit
                _
            $region86: #{tpu_custom_call.1} parent=77 // pred_fallthru
              _
          $region78: #{tpu_custom_call.1} parent=73 // pred_fallthru
            _
          %420 = vnop
        $region74: #{tpu_custom_call.1} parent=23 // pred_fallthru
          _
        // Predicated region
        $region109: #{tpu_custom_call.1} parent=23 // pred_check
          %p421 = pneg %p160
        $region110: #{tpu_custom_call.1} parent=23 // pred_check_branch
          %423 = sbr.rel (%p421) target = $region112
        $region111: #{tpu_custom_call.1} parent=23 // pred_region
          %s424 = smul.u32 16, %s30
          %p425 = scmp.lt.s32.totalorder %s424, 31
          %s426 = scalar_select %p425, %s424, 31
          %s427 = smul.addr %s426, 4
          %s428 = scalar_lea.vmem %s4, %s427
          %s429 = smul.u32 16, %s30
        $region112: #{tpu_custom_call.1} parent=23 // pred_fallthru
          _
      $region24: #{tpu_custom_call.1} parent=5 // pred_fallthru
        _
      %p430 = scmp.le.s32.totalorder 1, %s22
      %p431 = scmp.lt.s32.totalorder %s22, 5
      %p432 = pnand %p430, %p431
      %p433 = pneg %p432
      // Predicated region
      $region113: #{tpu_custom_call.1} parent=5 // pred_check
        _
      $region114: #{tpu_custom_call.1} parent=5 // pred_check_branch
        %435 = sbr.rel (%p432) target = $region116
      $region115: #{tpu_custom_call.1} parent=5 // pred_region
        %s436 = ssub.s32 %s22, 1
        %s437 = sand.u32 %s73, 1
        %s438 = sand.u32 %s73, 1
        %s439 = smul.addr %s438, 32
        %s440 = scalar_lea.vmem [#allocation6], %s439
        // Predicated region
        $region117: #{tpu_custom_call.1} parent=115 // pred_check
          %p441 = pneg %p86
        $region118: #{tpu_custom_call.1} parent=115 // pred_check_branch
          %443 = sbr.rel (%p441) target = $region120
        $region119: #{tpu_custom_call.1} parent=115 // pred_region
          _
        $region120: #{tpu_custom_call.1} parent=115 // pred_fallthru
          _
        %s444 = sand.u32 %s99, 1
        %s445 = scalar_lea.sflag [#allocation8], %s444
        %s446 = sand.u32 %s99, 1
        %s447 = scalar_lea.vmem [#allocation7], %s446
        // Predicated region
        $region121: #{tpu_custom_call.1} parent=115 // pred_check
          %p448 = pneg %p112
        $region122: #{tpu_custom_call.1} parent=115 // pred_check_branch
          %450 = sbr.rel (%p448) target = $region124
        $region123: #{tpu_custom_call.1} parent=115 // pred_region
          %452 = dma.done %s445, 16
        $region124: #{tpu_custom_call.1} parent=115 // pred_fallthru
          _
        %s453 = sand.u32 %s127, 1
        %s454 = sand.u32 %s127, 1
        %s455 = smul.addr %s454, 16
        %s456 = scalar_lea.vmem [#allocation11], %s455
        // Predicated region
        $region125: #{tpu_custom_call.1} parent=115 // pred_check
          %p457 = pneg %p140
        $region126: #{tpu_custom_call.1} parent=115 // pred_check_branch
          %459 = sbr.rel (%p457) target = $region128
        $region127: #{tpu_custom_call.1} parent=115 // pred_region
          _
        $region128: #{tpu_custom_call.1} parent=115 // pred_fallthru
          _
        // Predicated region
        $region129: #{tpu_custom_call.1} parent=115 // pred_check
          %p460 = pneg %p208
        $region130: #{tpu_custom_call.1} parent=115 // pred_check_branch
          %462 = sbr.rel (%p460) target = $region132
        $region131: #{tpu_custom_call.1} parent=115 // pred_region
          %464 = dma.done [#allocation10], 16
        $region132: #{tpu_custom_call.1} parent=115 // pred_fallthru
          _
        %465 = sfence
        %s466 = smul.u32 2, %s31
        %p467 = scmp.lt.s32.totalorder %s466, 3
        %s468 = scalar_select %p467, %s466, 3
        %s469 = smul.addr %s468, 8
        %s470 = scalar_lea.vmem %s0, %s469
        %p471 = pneg %p60
        %p472 = pneg %p57
        %s473 = sand.u32 %s73, 1
        %s474 = sand.u32 %s73, 1
        %s475 = smul.addr %s474, 32
        %s476 = scalar_lea.vmem [#allocation6], %s475
        %p477 = pneg %p86
        %p478 = pneg %p83
        %s479 = sand.u32 %s99, 1
        %s480 = scalar_lea.sflag [#allocation8], %s479
        %s481 = sand.u32 %s99, 1
        %s482 = scalar_lea.vmem [#allocation7], %s481
        %p483 = pneg %p112
        %p484 = pneg %p109
        %s485 = sand.u32 %s127, 1
        %s486 = sand.u32 %s127, 1
        %s487 = smul.addr %s486, 16
        %s488 = scalar_lea.vmem [#allocation11], %s487
        %p489 = pneg %p140
        %p490 = pneg %p137
        %s491 = smul.u32 16, %s32
        %p492 = scmp.lt.s32.totalorder %s491, 31
        %s493 = scalar_select %p492, %s491, 31
        %s494 = smul.addr %s493, 4
        %s495 = scalar_lea.vmem %s4, %s494
        %p496 = pneg %p166
        %p497 = pneg %p163
        %p498 = pneg %p187
        %p499 = pneg %p184
        %p500 = pneg %p208
        %p501 = pneg %p205
        %p502 = pneg %p234
        %p503 = pneg %p231
        %s504 = sand.u32 %s221, 1
        %s505 = scalar_lea.sflag [#allocation9], %s504
        %s506 = sand.u32 %s221, 1
        %s507 = smul.addr %s506, 16
        %s508 = scalar_lea.vmem [#allocation13], %s507
        %p509 = pneg %p260
        %p510 = pneg %p257
        %s511 = smul.u32 2, %s31
        %p512 = scmp.lt.s32.totalorder %s511, 3
        %s513 = scalar_select %p512, %s511, 3
        %s514 = smul.addr %s513, 8
        %s515 = scalar_lea.vmem %s8, %s514
        %s516 = smul.u32 2, %s31
        %p517 = scmp.lt.s32.totalorder %s516, 3
        %s518 = scalar_select %p517, %s516, 3
        %s519 = smul.addr %s518, 8
        %s520 = scalar_lea.vmem %s0, %s519
        %s521 = smul.u32 2, %s31
        %s522 = smul.u32 2, %s31
        %s523 = smul.u32 16, %s32
        %p524 = scmp.lt.s32.totalorder %s523, 31
        %s525 = scalar_select %p524, %s523, 31
        %s526 = smul.addr %s525, 4
        %s527 = scalar_lea.vmem %s4, %s526
        %s528 = smul.u32 16, %s32
        %s529 = smul.u32 2, %s31
        %s530 = smul.u32 2, %s31
        %p531 = scmp.lt.s32.totalorder %s530, 3
        %s532 = scalar_select %p531, %s530, 3
        %s533 = smul.addr %s532, 8
        %s534 = scalar_lea.vmem %s8, %s533
        %s535 = smul.u32 2, %s31
        %p536 = scmp.eq.s32.totalorder %s32, 0
        // Predicated region
        $region133: #{tpu_custom_call.1} parent=115 // pred_check
          %p537 = pneg %p536
        $region134: #{tpu_custom_call.1} parent=115 // pred_check_branch
          %539 = sbr.rel (%p537) target = $region136
        $region135: #{tpu_custom_call.1} parent=115 // pred_region
          %vm540 = vcmask 7168
          %541 = vst.msk [vmem:[#allocation2] sm:$0xff] %vm540, -inf
          %542 = vst.msk [vmem:[#allocation2 + $0x8] sm:$0xff] %vm540, -inf
          %543 = vst.msk [vmem:[#allocation3] sm:$0xff] %vm540, 0.0
          %544 = vst.msk [vmem:[#allocation3 + $0x8] sm:$0xff] %vm540, 0.0
          %vm545 = vcmask 261120
          %546 = vst.msk [vmem:[#allocation4] sm:$0xff] %vm545, 0.0
          %547 = vst.msk [vmem:[#allocation4 + $0x8] sm:$0xff] %vm545, 0.0
          %548 = vst.msk [vmem:[#allocation5] sm:$0xff] %vm540, 0.0
          %549 = vst.msk [vmem:[#allocation5 + $0x8] sm:$0xff] %vm540, 0.0
        $region136: #{tpu_custom_call.1} parent=115 // pred_fallthru
          _
        %v550 = vld [vmem:[%s520] sm:$0xff]
        %v551 = vld [vmem:[%s520 + $0x8] sm:$0xff]
        %v552 = vld [vmem:[%s440] sm:$0xff]
        %v553 = vld [vmem:[%s440 + $0x8] sm:$0xff]
        %v554 = vld [vmem:[%s440 + $0x10] sm:$0xff]
        %v555 = vld [vmem:[%s440 + $0x18] sm:$0xff]
        %557 = vset.pattern.permute.xlu0 0
        %558 = vperm.xlu0 %557, %v550
        %v559 = vpop.permute.xlu0 %558
        %562 = vset.pattern.permute.xlu0 0
        %563 = vperm.xlu0 %562, %v551
        %v564 = vpop.permute.xlu0 %563
        %v566 = vperm.slane %v552, 0
        %v567 = vadd.f32 %v559, %v566
        %v568 = vadd.f32 %v564, %v566
        %v569 = vmax.f32 %v567, 0.0
        %v570 = vmax.f32 %v568, 0.0
        %s571 = sld [smem:[#allocation12]]
        %s572 = sld [smem:[#allocation12 + $0x20]]
        %v573 = vstv %s571
        %v574 = vmul.f32 %v569, %v573
        %v575 = vmul.f32 %v570, %v573
        %v576 = vadd.f32 %v574, 0.0
        %v577 = vadd.f32 %v575, 0.0
        %v578 = vstv %s572
        %v579 = vmul.f32 %v569, %v578
        %v580 = vmul.f32 %v570, %v578
        %v581 = vadd.f32 %v579, 0.0
        %v582 = vadd.f32 %v580, 0.0
        %583 = vset.pattern.permute.xlu0 1
        %584 = vperm.xlu0 %583, %v550
        %v585 = vpop.permute.xlu0 %584
        %587 = vset.pattern.permute.xlu0 1
        %588 = vperm.xlu0 %587, %v551
        %v589 = vpop.permute.xlu0 %588
        %v591 = vperm.slane %v552, 1
        %v592 = vadd.f32 %v585, %v591
        %v593 = vadd.f32 %v589, %v591
        %v594 = vmax.f32 %v592, 0.0
        %v595 = vmax.f32 %v593, 0.0
        %s596 = sld [smem:[#allocation12 + $0x1]]
        %s597 = sld [smem:[#allocation12 + $0x21]]
        %v598 = vstv %s596
        %v599 = vmul.f32 %v594, %v598
        %v600 = vmul.f32 %v595, %v598
        %v601 = vadd.f32 %v576, %v599
        %v602 = vadd.f32 %v577, %v600
        %v603 = vstv %s597
        %v604 = vmul.f32 %v594, %v603
        %v605 = vmul.f32 %v595, %v603
        %v606 = vadd.f32 %v581, %v604
        %v607 = vadd.f32 %v582, %v605
        %608 = vset.pattern.permute.xlu0 2
        %609 = vperm.xlu0 %608, %v550
        %v610 = vpop.permute.xlu0 %609
        %612 = vset.pattern.permute.xlu0 2
        %613 = vperm.xlu0 %612, %v551
        %v614 = vpop.permute.xlu0 %613
        %v616 = vperm.slane %v552, 2
        %v617 = vadd.f32 %v610, %v616
        %v618 = vadd.f32 %v614, %v616
        %v619 = vmax.f32 %v617, 0.0
        %v620 = vmax.f32 %v618, 0.0
        %s621 = sld [smem:[#allocation12 + $0x2]]
        %s622 = sld [smem:[#allocation12 + $0x22]]
        %v623 = vstv %s621
        %v624 = vmul.f32 %v619, %v623
        %v625 = vmul.f32 %v620, %v623
        %v626 = vadd.f32 %v601, %v624
        %v627 = vadd.f32 %v602, %v625
        %v628 = vstv %s622
        %v629 = vmul.f32 %v619, %v628
        %v630 = vmul.f32 %v620, %v628
        %v631 = vadd.f32 %v606, %v629
        %v632 = vadd.f32 %v607, %v630
        %633 = vset.pattern.permute.xlu0 3
        %634 = vperm.xlu0 %633, %v550
        %v635 = vpop.permute.xlu0 %634
        %637 = vset.pattern.permute.xlu0 3
        %638 = vperm.xlu0 %637, %v551
        %v639 = vpop.permute.xlu0 %638
        %v641 = vperm.slane %v552, 3
        %v642 = vadd.f32 %v635, %v641
        %v643 = vadd.f32 %v639, %v641
        %v644 = vmax.f32 %v642, 0.0
        %v645 = vmax.f32 %v643, 0.0
        %s646 = sld [smem:[#allocation12 + $0x3]]
        %s647 = sld [smem:[#allocation12 + $0x23]]
        %v648 = vstv %s646
        %v649 = vmul.f32 %v644, %v648
        %v650 = vmul.f32 %v645, %v648
        %v651 = vadd.f32 %v626, %v649
        %v652 = vadd.f32 %v627, %v650
        %v653 = vstv %s647
        %v654 = vmul.f32 %v644, %v653
        %v655 = vmul.f32 %v645, %v653
        %v656 = vadd.f32 %v631, %v654
        %v657 = vadd.f32 %v632, %v655
        %658 = vset.pattern.permute.xlu0 4
        %659 = vperm.xlu0 %658, %v550
        %v660 = vpop.permute.xlu0 %659
        %662 = vset.pattern.permute.xlu0 4
        %663 = vperm.xlu0 %662, %v551
        %v664 = vpop.permute.xlu0 %663
        %v666 = vperm.slane %v552, 4
        %v667 = vadd.f32 %v660, %v666
        %v668 = vadd.f32 %v664, %v666
        %v669 = vmax.f32 %v667, 0.0
        %v670 = vmax.f32 %v668, 0.0
        %s671 = sld [smem:[#allocation12 + $0x4]]
        %s672 = sld [smem:[#allocation12 + $0x24]]
        %v673 = vstv %s671
        %v674 = vmul.f32 %v669, %v673
        %v675 = vmul.f32 %v670, %v673
        %v676 = vadd.f32 %v651, %v674
        %v677 = vadd.f32 %v652, %v675
        %v678 = vstv %s672
        %v679 = vmul.f32 %v669, %v678
        %v680 = vmul.f32 %v670, %v678
        %v681 = vadd.f32 %v656, %v679
        %v682 = vadd.f32 %v657, %v680
        %683 = vset.pattern.permute.xlu0 5
        %684 = vperm.xlu0 %683, %v550
        %v685 = vpop.permute.xlu0 %684
        %687 = vset.pattern.permute.xlu0 5
        %688 = vperm.xlu0 %687, %v551
        %v689 = vpop.permute.xlu0 %688
        %v691 = vperm.slane %v552, 5
        %v692 = vadd.f32 %v685, %v691
        %v693 = vadd.f32 %v689, %v691
        %v694 = vmax.f32 %v692, 0.0
        %v695 = vmax.f32 %v693, 0.0
        %s696 = sld [smem:[#allocation12 + $0x5]]
        %s697 = sld [smem:[#allocation12 + $0x25]]
        %v698 = vstv %s696
        %v699 = vmul.f32 %v694, %v698
        %v700 = vmul.f32 %v695, %v698
        %v701 = vadd.f32 %v676, %v699
        %v702 = vadd.f32 %v677, %v700
        %v703 = vstv %s697
        %v704 = vmul.f32 %v694, %v703
        %v705 = vmul.f32 %v695, %v703
        %v706 = vadd.f32 %v681, %v704
        %v707 = vadd.f32 %v682, %v705
        %708 = vset.pattern.permute.xlu0 6
        %709 = vperm.xlu0 %708, %v550
        %v710 = vpop.permute.xlu0 %709
        %712 = vset.pattern.permute.xlu0 6
        %713 = vperm.xlu0 %712, %v551
        %v714 = vpop.permute.xlu0 %713
        %v716 = vperm.slane %v552, 6
        %v717 = vadd.f32 %v710, %v716
        %v718 = vadd.f32 %v714, %v716
        %v719 = vmax.f32 %v717, 0.0
        %v720 = vmax.f32 %v718, 0.0
        %s721 = sld [smem:[#allocation12 + $0x6]]
        %s722 = sld [smem:[#allocation12 + $0x26]]
        %v723 = vstv %s721
        %v724 = vmul.f32 %v719, %v723
        %v725 = vmul.f32 %v720, %v723
        %v726 = vadd.f32 %v701, %v724
        %v727 = vadd.f32 %v702, %v725
        %v728 = vstv %s722
        %v729 = vmul.f32 %v719, %v728
        %v730 = vmul.f32 %v720, %v728
        %v731 = vadd.f32 %v706, %v729
        %v732 = vadd.f32 %v707, %v730
        %733 = vset.pattern.permute.xlu0 7
        %734 = vperm.xlu0 %733, %v550
        %v735 = vpop.permute.xlu0 %734
        %737 = vset.pattern.permute.xlu0 7
        %738 = vperm.xlu0 %737, %v551
        %v739 = vpop.permute.xlu0 %738
        %v741 = vperm.slane %v552, 7
        %v742 = vadd.f32 %v735, %v741
        %v743 = vadd.f32 %v739, %v741
        %v744 = vmax.f32 %v742, 0.0
        %v745 = vmax.f32 %v743, 0.0
        %s746 = sld [smem:[#allocation12 + $0x7]]
        %s747 = sld [smem:[#allocation12 + $0x27]]
        %v748 = vstv %s746
        %v749 = vmul.f32 %v744, %v748
        %v750 = vmul.f32 %v745, %v748
        %v751 = vadd.f32 %v726, %v749
        %v752 = vadd.f32 %v727, %v750
        %v753 = vstv %s747
        %v754 = vmul.f32 %v744, %v753
        %v755 = vmul.f32 %v745, %v753
        %v756 = vadd.f32 %v731, %v754
        %v757 = vadd.f32 %v732, %v755
        %758 = vset.pattern.permute.xlu0 8
        %759 = vperm.xlu0 %758, %v550
        %v760 = vpop.permute.xlu0 %759
        %762 = vset.pattern.permute.xlu0 8
        %763 = vperm.xlu0 %762, %v551
        %v764 = vpop.permute.xlu0 %763
        %v766 = vperm.slane %v553, 0
        %v767 = vadd.f32 %v760, %v766
        %v768 = vadd.f32 %v764, %v766
        %v769 = vmax.f32 %v767, 0.0
        %v770 = vmax.f32 %v768, 0.0
        %s771 = sld [smem:[#allocation12 + $0x8]]
        %s772 = sld [smem:[#allocation12 + $0x28]]
        %v773 = vstv %s771
        %v774 = vmul.f32 %v769, %v773
        %v775 = vmul.f32 %v770, %v773
        %v776 = vadd.f32 %v751, %v774
        %v777 = vadd.f32 %v752, %v775
        %v778 = vstv %s772
        %v779 = vmul.f32 %v769, %v778
        %v780 = vmul.f32 %v770, %v778
        %v781 = vadd.f32 %v756, %v779
        %v782 = vadd.f32 %v757, %v780
        %783 = vset.pattern.permute.xlu0 9
        %784 = vperm.xlu0 %783, %v550
        %v785 = vpop.permute.xlu0 %784
        %787 = vset.pattern.permute.xlu0 9
        %788 = vperm.xlu0 %787, %v551
        %v789 = vpop.permute.xlu0 %788
        %v791 = vperm.slane %v553, 1
        %v792 = vadd.f32 %v785, %v791
        %v793 = vadd.f32 %v789, %v791
        %v794 = vmax.f32 %v792, 0.0
        %v795 = vmax.f32 %v793, 0.0
        %s796 = sld [smem:[#allocation12 + $0x9]]
        %s797 = sld [smem:[#allocation12 + $0x29]]
        %v798 = vstv %s796
        %v799 = vmul.f32 %v794, %v798
        %v800 = vmul.f32 %v795, %v798
        %v801 = vadd.f32 %v776, %v799
        %v802 = vadd.f32 %v777, %v800
        %v803 = vstv %s797
        %v804 = vmul.f32 %v794, %v803
        %v805 = vmul.f32 %v795, %v803
        %v806 = vadd.f32 %v781, %v804
        %v807 = vadd.f32 %v782, %v805
        %808 = vset.pattern.permute.xlu0 10
        %809 = vperm.xlu0 %808, %v550
        %v810 = vpop.permute.xlu0 %809
        %812 = vset.pattern.permute.xlu0 10
        %813 = vperm.xlu0 %812, %v551
        %v814 = vpop.permute.xlu0 %813
        %v816 = vperm.slane %v553, 2
        %v817 = vadd.f32 %v810, %v816
        %v818 = vadd.f32 %v814, %v816
        %v819 = vmax.f32 %v817, 0.0
        %v820 = vmax.f32 %v818, 0.0
        %s821 = sld [smem:[#allocation12 + $0xa]]
        %s822 = sld [smem:[#allocation12 + $0x2a]]
        %v823 = vstv %s821
        %v824 = vmul.f32 %v819, %v823
        %v825 = vmul.f32 %v820, %v823
        %v826 = vadd.f32 %v801, %v824
        %v827 = vadd.f32 %v802, %v825
        %v828 = vstv %s822
        %v829 = vmul.f32 %v819, %v828
        %v830 = vmul.f32 %v820, %v828
        %v831 = vadd.f32 %v806, %v829
        %v832 = vadd.f32 %v807, %v830
        %833 = vset.pattern.permute.xlu0 11
        %834 = vperm.xlu0 %833, %v550
        %v835 = vpop.permute.xlu0 %834
        %837 = vset.pattern.permute.xlu0 11
        %838 = vperm.xlu0 %837, %v551
        %v839 = vpop.permute.xlu0 %838
        %v841 = vperm.slane %v553, 3
        %v842 = vadd.f32 %v835, %v841
        %v843 = vadd.f32 %v839, %v841
        %v844 = vmax.f32 %v842, 0.0
        %v845 = vmax.f32 %v843, 0.0
        %s846 = sld [smem:[#allocation12 + $0xb]]
        %s847 = sld [smem:[#allocation12 + $0x2b]]
        %v848 = vstv %s846
        %v849 = vmul.f32 %v844, %v848
        %v850 = vmul.f32 %v845, %v848
        %v851 = vadd.f32 %v826, %v849
        %v852 = vadd.f32 %v827, %v850
        %v853 = vstv %s847
        %v854 = vmul.f32 %v844, %v853
        %v855 = vmul.f32 %v845, %v853
        %v856 = vadd.f32 %v831, %v854
        %v857 = vadd.f32 %v832, %v855
        %858 = vset.pattern.permute.xlu0 12
        %859 = vperm.xlu0 %858, %v550
        %v860 = vpop.permute.xlu0 %859
        %862 = vset.pattern.permute.xlu0 12
        %863 = vperm.xlu0 %862, %v551
        %v864 = vpop.permute.xlu0 %863
        %v866 = vperm.slane %v553, 4
        %v867 = vadd.f32 %v860, %v866
        %v868 = vadd.f32 %v864, %v866
        %v869 = vmax.f32 %v867, 0.0
        %v870 = vmax.f32 %v868, 0.0
        %s871 = sld [smem:[#allocation12 + $0xc]]
        %s872 = sld [smem:[#allocation12 + $0x2c]]
        %v873 = vstv %s871
        %v874 = vmul.f32 %v869, %v873
        %v875 = vmul.f32 %v870, %v873
        %v876 = vadd.f32 %v851, %v874
        %v877 = vadd.f32 %v852, %v875
        %v878 = vstv %s872
        %v879 = vmul.f32 %v869, %v878
        %v880 = vmul.f32 %v870, %v878
        %v881 = vadd.f32 %v856, %v879
        %v882 = vadd.f32 %v857, %v880
        %883 = vset.pattern.permute.xlu0 13
        %884 = vperm.xlu0 %883, %v550
        %v885 = vpop.permute.xlu0 %884
        %887 = vset.pattern.permute.xlu0 13
        %888 = vperm.xlu0 %887, %v551
        %v889 = vpop.permute.xlu0 %888
        %v891 = vperm.slane %v553, 5
        %v892 = vadd.f32 %v885, %v891
        %v893 = vadd.f32 %v889, %v891
        %v894 = vmax.f32 %v892, 0.0
        %v895 = vmax.f32 %v893, 0.0
        %s896 = sld [smem:[#allocation12 + $0xd]]
        %s897 = sld [smem:[#allocation12 + $0x2d]]
        %v898 = vstv %s896
        %v899 = vmul.f32 %v894, %v898
        %v900 = vmul.f32 %v895, %v898
        %v901 = vadd.f32 %v876, %v899
        %v902 = vadd.f32 %v877, %v900
        %v903 = vstv %s897
        %v904 = vmul.f32 %v894, %v903
        %v905 = vmul.f32 %v895, %v903
        %v906 = vadd.f32 %v881, %v904
        %v907 = vadd.f32 %v882, %v905
        %908 = vset.pattern.permute.xlu0 14
        %909 = vperm.xlu0 %908, %v550
        %v910 = vpop.permute.xlu0 %909
        %912 = vset.pattern.permute.xlu0 14
        %913 = vperm.xlu0 %912, %v551
        %v914 = vpop.permute.xlu0 %913
        %v916 = vperm.slane %v553, 6
        %v917 = vadd.f32 %v910, %v916
        %v918 = vadd.f32 %v914, %v916
        %v919 = vmax.f32 %v917, 0.0
        %v920 = vmax.f32 %v918, 0.0
        %s921 = sld [smem:[#allocation12 + $0xe]]
        %s922 = sld [smem:[#allocation12 + $0x2e]]
        %v923 = vstv %s921
        %v924 = vmul.f32 %v919, %v923
        %v925 = vmul.f32 %v920, %v923
        %v926 = vadd.f32 %v901, %v924
        %v927 = vadd.f32 %v902, %v925
        %v928 = vstv %s922
        %v929 = vmul.f32 %v919, %v928
        %v930 = vmul.f32 %v920, %v928
        %v931 = vadd.f32 %v906, %v929
        %v932 = vadd.f32 %v907, %v930
        %933 = vset.pattern.permute.xlu0 15
        %934 = vperm.xlu0 %933, %v550
        %v935 = vpop.permute.xlu0 %934
        %937 = vset.pattern.permute.xlu0 15
        %938 = vperm.xlu0 %937, %v551
        %v939 = vpop.permute.xlu0 %938
        %v941 = vperm.slane %v553, 7
        %v942 = vadd.f32 %v935, %v941
        %v943 = vadd.f32 %v939, %v941
        %v944 = vmax.f32 %v942, 0.0
        %v945 = vmax.f32 %v943, 0.0
        %s946 = sld [smem:[#allocation12 + $0xf]]
        %s947 = sld [smem:[#allocation12 + $0x2f]]
        %v948 = vstv %s946
        %v949 = vmul.f32 %v944, %v948
        %v950 = vmul.f32 %v945, %v948
        %v951 = vadd.f32 %v926, %v949
        %v952 = vadd.f32 %v927, %v950
        %v953 = vstv %s947
        %v954 = vmul.f32 %v944, %v953
        %v955 = vmul.f32 %v945, %v953
        %v956 = vadd.f32 %v931, %v954
        %v957 = vadd.f32 %v932, %v955
        %958 = vset.pattern.permute.xlu0 16
        %959 = vperm.xlu0 %958, %v550
        %v960 = vpop.permute.xlu0 %959
        %962 = vset.pattern.permute.xlu0 16
        %963 = vperm.xlu0 %962, %v551
        %v964 = vpop.permute.xlu0 %963
        %v966 = vperm.slane %v554, 0
        %v967 = vadd.f32 %v960, %v966
        %v968 = vadd.f32 %v964, %v966
        %v969 = vmax.f32 %v967, 0.0
        %v970 = vmax.f32 %v968, 0.0
        %s971 = sld [smem:[#allocation12 + $0x10]]
        %s972 = sld [smem:[#allocation12 + $0x30]]
        %v973 = vstv %s971
        %v974 = vmul.f32 %v969, %v973
        %v975 = vmul.f32 %v970, %v973
        %v976 = vadd.f32 %v951, %v974
        %v977 = vadd.f32 %v952, %v975
        %v978 = vstv %s972
        %v979 = vmul.f32 %v969, %v978
        %v980 = vmul.f32 %v970, %v978
        %v981 = vadd.f32 %v956, %v979
        %v982 = vadd.f32 %v957, %v980
        %983 = vset.pattern.permute.xlu0 17
        %984 = vperm.xlu0 %983, %v550
        %v985 = vpop.permute.xlu0 %984
        %987 = vset.pattern.permute.xlu0 17
        %988 = vperm.xlu0 %987, %v551
        %v989 = vpop.permute.xlu0 %988
        %v991 = vperm.slane %v554, 1
        %v992 = vadd.f32 %v985, %v991
        %v993 = vadd.f32 %v989, %v991
        %v994 = vmax.f32 %v992, 0.0
        %v995 = vmax.f32 %v993, 0.0
        %s996 = sld [smem:[#allocation12 + $0x11]]
        %s997 = sld [smem:[#allocation12 + $0x31]]
        %v998 = vstv %s996
        %v999 = vmul.f32 %v994, %v998
        %v1000 = vmul.f32 %v995, %v998
        %v1001 = vadd.f32 %v976, %v999
        %v1002 = vadd.f32 %v977, %v1000
        %v1003 = vstv %s997
        %v1004 = vmul.f32 %v994, %v1003
        %v1005 = vmul.f32 %v995, %v1003
        %v1006 = vadd.f32 %v981, %v1004
        %v1007 = vadd.f32 %v982, %v1005
        %1008 = vset.pattern.permute.xlu0 18
        %1009 = vperm.xlu0 %1008, %v550
        %v1010 = vpop.permute.xlu0 %1009
        %1012 = vset.pattern.permute.xlu0 18
        %1013 = vperm.xlu0 %1012, %v551
        %v1014 = vpop.permute.xlu0 %1013
        %v1016 = vperm.slane %v554, 2
        %v1017 = vadd.f32 %v1010, %v1016
        %v1018 = vadd.f32 %v1014, %v1016
        %v1019 = vmax.f32 %v1017, 0.0
        %v1020 = vmax.f32 %v1018, 0.0
        %s1021 = sld [smem:[#allocation12 + $0x12]]
        %s1022 = sld [smem:[#allocation12 + $0x32]]
        %v1023 = vstv %s1021
        %v1024 = vmul.f32 %v1019, %v1023
        %v1025 = vmul.f32 %v1020, %v1023
        %v1026 = vadd.f32 %v1001, %v1024
        %v1027 = vadd.f32 %v1002, %v1025
        %v1028 = vstv %s1022
        %v1029 = vmul.f32 %v1019, %v1028
        %v1030 = vmul.f32 %v1020, %v1028
        %v1031 = vadd.f32 %v1006, %v1029
        %v1032 = vadd.f32 %v1007, %v1030
        %1033 = vset.pattern.permute.xlu0 19
        %1034 = vperm.xlu0 %1033, %v550
        %v1035 = vpop.permute.xlu0 %1034
        %1037 = vset.pattern.permute.xlu0 19
        %1038 = vperm.xlu0 %1037, %v551
        %v1039 = vpop.permute.xlu0 %1038
        %v1041 = vperm.slane %v554, 3
        %v1042 = vadd.f32 %v1035, %v1041
        %v1043 = vadd.f32 %v1039, %v1041
        %v1044 = vmax.f32 %v1042, 0.0
        %v1045 = vmax.f32 %v1043, 0.0
        %s1046 = sld [smem:[#allocation12 + $0x13]]
        %s1047 = sld [smem:[#allocation12 + $0x33]]
        %v1048 = vstv %s1046
        %v1049 = vmul.f32 %v1044, %v1048
        %v1050 = vmul.f32 %v1045, %v1048
        %v1051 = vadd.f32 %v1026, %v1049
        %v1052 = vadd.f32 %v1027, %v1050
        %v1053 = vstv %s1047
        %v1054 = vmul.f32 %v1044, %v1053
        %v1055 = vmul.f32 %v1045, %v1053
        %v1056 = vadd.f32 %v1031, %v1054
        %v1057 = vadd.f32 %v1032, %v1055
        %1058 = vset.pattern.permute.xlu0 20
        %1059 = vperm.xlu0 %1058, %v550
        %v1060 = vpop.permute.xlu0 %1059
        %1062 = vset.pattern.permute.xlu0 20
        %1063 = vperm.xlu0 %1062, %v551
        %v1064 = vpop.permute.xlu0 %1063
        %v1066 = vperm.slane %v554, 4
        %v1067 = vadd.f32 %v1060, %v1066
        %v1068 = vadd.f32 %v1064, %v1066
        %v1069 = vmax.f32 %v1067, 0.0
        %v1070 = vmax.f32 %v1068, 0.0
        %s1071 = sld [smem:[#allocation12 + $0x14]]
        %s1072 = sld [smem:[#allocation12 + $0x34]]
        %v1073 = vstv %s1071
        %v1074 = vmul.f32 %v1069, %v1073
        %v1075 = vmul.f32 %v1070, %v1073
        %v1076 = vadd.f32 %v1051, %v1074
        %v1077 = vadd.f32 %v1052, %v1075
        %v1078 = vstv %s1072
        %v1079 = vmul.f32 %v1069, %v1078
        %v1080 = vmul.f32 %v1070, %v1078
        %v1081 = vadd.f32 %v1056, %v1079
        %v1082 = vadd.f32 %v1057, %v1080
        %1083 = vset.pattern.permute.xlu0 21
        %1084 = vperm.xlu0 %1083, %v550
        %v1085 = vpop.permute.xlu0 %1084
        %1087 = vset.pattern.permute.xlu0 21
        %1088 = vperm.xlu0 %1087, %v551
        %v1089 = vpop.permute.xlu0 %1088
        %v1091 = vperm.slane %v554, 5
        %v1092 = vadd.f32 %v1085, %v1091
        %v1093 = vadd.f32 %v1089, %v1091
        %v1094 = vmax.f32 %v1092, 0.0
        %v1095 = vmax.f32 %v1093, 0.0
        %s1096 = sld [smem:[#allocation12 + $0x15]]
        %s1097 = sld [smem:[#allocation12 + $0x35]]
        %v1098 = vstv %s1096
        %v1099 = vmul.f32 %v1094, %v1098
        %v1100 = vmul.f32 %v1095, %v1098
        %v1101 = vadd.f32 %v1076, %v1099
        %v1102 = vadd.f32 %v1077, %v1100
        %v1103 = vstv %s1097
        %v1104 = vmul.f32 %v1094, %v1103
        %v1105 = vmul.f32 %v1095, %v1103
        %v1106 = vadd.f32 %v1081, %v1104
        %v1107 = vadd.f32 %v1082, %v1105
        %1108 = vset.pattern.permute.xlu0 22
        %1109 = vperm.xlu0 %1108, %v550
        %v1110 = vpop.permute.xlu0 %1109
        %1112 = vset.pattern.permute.xlu0 22
        %1113 = vperm.xlu0 %1112, %v551
        %v1114 = vpop.permute.xlu0 %1113
        %v1116 = vperm.slane %v554, 6
        %v1117 = vadd.f32 %v1110, %v1116
        %v1118 = vadd.f32 %v1114, %v1116
        %v1119 = vmax.f32 %v1117, 0.0
        %v1120 = vmax.f32 %v1118, 0.0
        %s1121 = sld [smem:[#allocation12 + $0x16]]
        %s1122 = sld [smem:[#allocation12 + $0x36]]
        %v1123 = vstv %s1121
        %v1124 = vmul.f32 %v1119, %v1123
        %v1125 = vmul.f32 %v1120, %v1123
        %v1126 = vadd.f32 %v1101, %v1124
        %v1127 = vadd.f32 %v1102, %v1125
        %v1128 = vstv %s1122
        %v1129 = vmul.f32 %v1119, %v1128
        %v1130 = vmul.f32 %v1120, %v1128
        %v1131 = vadd.f32 %v1106, %v1129
        %v1132 = vadd.f32 %v1107, %v1130
        %1133 = vset.pattern.permute.xlu0 23
        %1134 = vperm.xlu0 %1133, %v550
        %v1135 = vpop.permute.xlu0 %1134
        %1137 = vset.pattern.permute.xlu0 23
        %1138 = vperm.xlu0 %1137, %v551
        %v1139 = vpop.permute.xlu0 %1138
        %v1141 = vperm.slane %v554, 7
        %v1142 = vadd.f32 %v1135, %v1141
        %v1143 = vadd.f32 %v1139, %v1141
        %v1144 = vmax.f32 %v1142, 0.0
        %v1145 = vmax.f32 %v1143, 0.0
        %s1146 = sld [smem:[#allocation12 + $0x17]]
        %s1147 = sld [smem:[#allocation12 + $0x37]]
        %v1148 = vstv %s1146
        %v1149 = vmul.f32 %v1144, %v1148
        %v1150 = vmul.f32 %v1145, %v1148
        %v1151 = vadd.f32 %v1126, %v1149
        %v1152 = vadd.f32 %v1127, %v1150
        %v1153 = vstv %s1147
        %v1154 = vmul.f32 %v1144, %v1153
        %v1155 = vmul.f32 %v1145, %v1153
        %v1156 = vadd.f32 %v1131, %v1154
        %v1157 = vadd.f32 %v1132, %v1155
        %1158 = vset.pattern.permute.xlu0 24
        %1159 = vperm.xlu0 %1158, %v550
        %v1160 = vpop.permute.xlu0 %1159
        %1162 = vset.pattern.permute.xlu0 24
        %1163 = vperm.xlu0 %1162, %v551
        %v1164 = vpop.permute.xlu0 %1163
        %v1166 = vperm.slane %v555, 0
        %v1167 = vadd.f32 %v1160, %v1166
        %v1168 = vadd.f32 %v1164, %v1166
        %v1169 = vmax.f32 %v1167, 0.0
        %v1170 = vmax.f32 %v1168, 0.0
        %s1171 = sld [smem:[#allocation12 + $0x18]]
        %s1172 = sld [smem:[#allocation12 + $0x38]]
        %v1173 = vstv %s1171
        %v1174 = vmul.f32 %v1169, %v1173
        %v1175 = vmul.f32 %v1170, %v1173
        %v1176 = vadd.f32 %v1151, %v1174
        %v1177 = vadd.f32 %v1152, %v1175
        %v1178 = vstv %s1172
        %v1179 = vmul.f32 %v1169, %v1178
        %v1180 = vmul.f32 %v1170, %v1178
        %v1181 = vadd.f32 %v1156, %v1179
        %v1182 = vadd.f32 %v1157, %v1180
        %1183 = vset.pattern.permute.xlu0 25
        %1184 = vperm.xlu0 %1183, %v550
        %v1185 = vpop.permute.xlu0 %1184
        %1187 = vset.pattern.permute.xlu0 25
        %1188 = vperm.xlu0 %1187, %v551
        %v1189 = vpop.permute.xlu0 %1188
        %v1191 = vperm.slane %v555, 1
        %v1192 = vadd.f32 %v1185, %v1191
        %v1193 = vadd.f32 %v1189, %v1191
        %v1194 = vmax.f32 %v1192, 0.0
        %v1195 = vmax.f32 %v1193, 0.0
        %s1196 = sld [smem:[#allocation12 + $0x19]]
        %s1197 = sld [smem:[#allocation12 + $0x39]]
        %v1198 = vstv %s1196
        %v1199 = vmul.f32 %v1194, %v1198
        %v1200 = vmul.f32 %v1195, %v1198
        %v1201 = vadd.f32 %v1176, %v1199
        %v1202 = vadd.f32 %v1177, %v1200
        %v1203 = vstv %s1197
        %v1204 = vmul.f32 %v1194, %v1203
        %v1205 = vmul.f32 %v1195, %v1203
        %v1206 = vadd.f32 %v1181, %v1204
        %v1207 = vadd.f32 %v1182, %v1205
        %1208 = vset.pattern.permute.xlu0 26
        %1209 = vperm.xlu0 %1208, %v550
        %v1210 = vpop.permute.xlu0 %1209
        %1212 = vset.pattern.permute.xlu0 26
        %1213 = vperm.xlu0 %1212, %v551
        %v1214 = vpop.permute.xlu0 %1213
        %v1216 = vperm.slane %v555, 2
        %v1217 = vadd.f32 %v1210, %v1216
        %v1218 = vadd.f32 %v1214, %v1216
        %v1219 = vmax.f32 %v1217, 0.0
        %v1220 = vmax.f32 %v1218, 0.0
        %s1221 = sld [smem:[#allocation12 + $0x1a]]
        %s1222 = sld [smem:[#allocation12 + $0x3a]]
        %v1223 = vstv %s1221
        %v1224 = vmul.f32 %v1219, %v1223
        %v1225 = vmul.f32 %v1220, %v1223
        %v1226 = vadd.f32 %v1201, %v1224
        %v1227 = vadd.f32 %v1202, %v1225
        %v1228 = vstv %s1222
        %v1229 = vmul.f32 %v1219, %v1228
        %v1230 = vmul.f32 %v1220, %v1228
        %v1231 = vadd.f32 %v1206, %v1229
        %v1232 = vadd.f32 %v1207, %v1230
        %1233 = vset.pattern.permute.xlu0 27
        %1234 = vperm.xlu0 %1233, %v550
        %v1235 = vpop.permute.xlu0 %1234
        %1237 = vset.pattern.permute.xlu0 27
        %1238 = vperm.xlu0 %1237, %v551
        %v1239 = vpop.permute.xlu0 %1238
        %v1241 = vperm.slane %v555, 3
        %v1242 = vadd.f32 %v1235, %v1241
        %v1243 = vadd.f32 %v1239, %v1241
        %v1244 = vmax.f32 %v1242, 0.0
        %v1245 = vmax.f32 %v1243, 0.0
        %s1246 = sld [smem:[#allocation12 + $0x1b]]
        %s1247 = sld [smem:[#allocation12 + $0x3b]]
        %v1248 = vstv %s1246
        %v1249 = vmul.f32 %v1244, %v1248
        %v1250 = vmul.f32 %v1245, %v1248
        %v1251 = vadd.f32 %v1226, %v1249
        %v1252 = vadd.f32 %v1227, %v1250
        %v1253 = vstv %s1247
        %v1254 = vmul.f32 %v1244, %v1253
        %v1255 = vmul.f32 %v1245, %v1253
        %v1256 = vadd.f32 %v1231, %v1254
        %v1257 = vadd.f32 %v1232, %v1255
        %1258 = vset.pattern.permute.xlu0 28
        %1259 = vperm.xlu0 %1258, %v550
        %v1260 = vpop.permute.xlu0 %1259
        %1262 = vset.pattern.permute.xlu0 28
        %1263 = vperm.xlu0 %1262, %v551
        %v1264 = vpop.permute.xlu0 %1263
        %v1266 = vperm.slane %v555, 4
        %v1267 = vadd.f32 %v1260, %v1266
        %v1268 = vadd.f32 %v1264, %v1266
        %v1269 = vmax.f32 %v1267, 0.0
        %v1270 = vmax.f32 %v1268, 0.0
        %s1271 = sld [smem:[#allocation12 + $0x1c]]
        %s1272 = sld [smem:[#allocation12 + $0x3c]]
        %v1273 = vstv %s1271
        %v1274 = vmul.f32 %v1269, %v1273
        %v1275 = vmul.f32 %v1270, %v1273
        %v1276 = vadd.f32 %v1251, %v1274
        %v1277 = vadd.f32 %v1252, %v1275
        %v1278 = vstv %s1272
        %v1279 = vmul.f32 %v1269, %v1278
        %v1280 = vmul.f32 %v1270, %v1278
        %v1281 = vadd.f32 %v1256, %v1279
        %v1282 = vadd.f32 %v1257, %v1280
        %1283 = vset.pattern.permute.xlu0 29
        %1284 = vperm.xlu0 %1283, %v550
        %v1285 = vpop.permute.xlu0 %1284
        %1287 = vset.pattern.permute.xlu0 29
        %1288 = vperm.xlu0 %1287, %v551
        %v1289 = vpop.permute.xlu0 %1288
        %v1291 = vperm.slane %v555, 5
        %v1292 = vadd.f32 %v1285, %v1291
        %v1293 = vadd.f32 %v1289, %v1291
        %v1294 = vmax.f32 %v1292, 0.0
        %v1295 = vmax.f32 %v1293, 0.0
        %s1296 = sld [smem:[#allocation12 + $0x1d]]
        %s1297 = sld [smem:[#allocation12 + $0x3d]]
        %v1298 = vstv %s1296
        %v1299 = vmul.f32 %v1294, %v1298
        %v1300 = vmul.f32 %v1295, %v1298
        %v1301 = vadd.f32 %v1276, %v1299
        %v1302 = vadd.f32 %v1277, %v1300
        %v1303 = vstv %s1297
        %v1304 = vmul.f32 %v1294, %v1303
        %v1305 = vmul.f32 %v1295, %v1303
        %v1306 = vadd.f32 %v1281, %v1304
        %v1307 = vadd.f32 %v1282, %v1305
        %1308 = vset.pattern.permute.xlu0 30
        %1309 = vperm.xlu0 %1308, %v550
        %v1310 = vpop.permute.xlu0 %1309
        %1312 = vset.pattern.permute.xlu0 30
        %1313 = vperm.xlu0 %1312, %v551
        %v1314 = vpop.permute.xlu0 %1313
        %v1316 = vperm.slane %v555, 6
        %v1317 = vadd.f32 %v1310, %v1316
        %v1318 = vadd.f32 %v1314, %v1316
        %v1319 = vmax.f32 %v1317, 0.0
        %v1320 = vmax.f32 %v1318, 0.0
        %s1321 = sld [smem:[#allocation12 + $0x1e]]
        %s1322 = sld [smem:[#allocation12 + $0x3e]]
        %v1323 = vstv %s1321
        %v1324 = vmul.f32 %v1319, %v1323
        %v1325 = vmul.f32 %v1320, %v1323
        %v1326 = vadd.f32 %v1301, %v1324
        %v1327 = vadd.f32 %v1302, %v1325
        %v1328 = vstv %s1322
        %v1329 = vmul.f32 %v1319, %v1328
        %v1330 = vmul.f32 %v1320, %v1328
        %v1331 = vadd.f32 %v1306, %v1329
        %v1332 = vadd.f32 %v1307, %v1330
        %1333 = vset.pattern.permute.xlu0 31
        %1334 = vperm.xlu0 %1333, %v550
        %v1335 = vpop.permute.xlu0 %1334
        %1337 = vset.pattern.permute.xlu0 31
        %1338 = vperm.xlu0 %1337, %v551
        %v1339 = vpop.permute.xlu0 %1338
        %v1341 = vperm.slane %v555, 7
        %v1342 = vadd.f32 %v1335, %v1341
        %v1343 = vadd.f32 %v1339, %v1341
        %v1344 = vmax.f32 %v1342, 0.0
        %v1345 = vmax.f32 %v1343, 0.0
        %s1346 = sld [smem:[#allocation12 + $0x1f]]
        %s1347 = sld [smem:[#allocation12 + $0x3f]]
        %v1348 = vstv %s1346
        %v1349 = vmul.f32 %v1344, %v1348
        %v1350 = vmul.f32 %v1345, %v1348
        %v1351 = vadd.f32 %v1326, %v1349
        %v1352 = vadd.f32 %v1327, %v1350
        %v1353 = vstv %s1347
        %v1354 = vmul.f32 %v1344, %v1353
        %v1355 = vmul.f32 %v1345, %v1353
        %v1356 = vadd.f32 %v1331, %v1354
        %v1357 = vadd.f32 %v1332, %v1355
        %s1358 = sld [smem:[#allocation12 + $0x40]]
        %v1359 = vstv %s1358
        %v1360 = vadd.f32 %v1351, %v1359
        %v1361 = vadd.f32 %v1352, %v1359
        %s1362 = sld [smem:[#allocation12 + $0x41]]
        %v1363 = vstv %s1362
        %v1364 = vadd.f32 %v1356, %v1363
        %v1365 = vadd.f32 %v1357, %v1363
        %v1366 = vmul.f32 %v1364, 0.5
        %v1367 = vmul.f32 %v1365, 0.5
        %v1368 = vmul.f32 %v1366, 1.442695
        %v1369 = vpow.pop %v1368
        %v1370 = vmul.f32 %v1367, 1.442695
        %v1371 = vpow.pop %v1370
        %v1372 = vmul.f32 %v1369, %v1369
        %v1373 = vmul.f32 %v1371, %v1371
        %v1374 = vmul.f32 %v1372, 0.5
        %v1375 = vmul.f32 %v1373, 0.5
        %v1376 = vsub.f32 %v1360, %v1374
        %v1377 = vsub.f32 %v1361, %v1375
        %v1378 = vld [vmem:[%s447] sm:$0x1]
        %v1379 = vsub.f32 -0.6931472, %v1366
        %v1380 = vsub.f32 -0.6931472, %v1367
        %v1382 = vperm.slane %v1378, 0
        %v1384 = vsub.f32 %v1376, %v1382
        %v1385 = vsub.f32 %v1377, %v1382
        %v1386 = vmul.f32 %v1384, %v1384
        %v1387 = vmul.f32 %v1385, %v1385
        %v1388 = vadd.f32 %v1372, %v1386
        %v1389 = vadd.f32 %v1373, %v1387
        %v1390 = vmul.f32 %v1388, 2.0
        %v1391 = vmul.f32 %v1389, 2.0
        %v1392 = vld [vmem:[#allocation5] sm:$0xff]
        %v1393 = vld [vmem:[#allocation5 + $0x8] sm:$0xff]
        %v1394 = vadd.f32 %v1379, %v1390
        %v1395 = vadd.f32 %v1380, %v1391
        %v1396 = vsub.f32 %v1394, 0.5
        %v1397 = vsub.f32 %v1395, 0.5
        %1398 = vadd.xlane.f32.xlu0 %v1396
        %v1399 = vpop.xlane.xlu0 %1398
        %1400 = vadd.xlane.f32.xlu0 %v1397
        %v1401 = vpop.xlane.xlu0 %1400
        %v1402 = vadd.f32 %v1392, %v1399
        %v1403 = vadd.f32 %v1393, %v1401
        %vm1404 = vcmask 7168
        %1405 = vst.msk [vmem:[#allocation5] sm:$0xff] %vm1404, %v1402
        %1406 = vst.msk [vmem:[#allocation5 + $0x8] sm:$0xff] %vm1404, %v1403
        %v1407 = vld [vmem:[%s456] sm:$0xff]
        %v1408 = vld [vmem:[%s456 + $0x8] sm:$0xff]
        %v1409 = vmul.f32 %v1369, %v1407
        %v1410 = vmul.f32 %v1371, %v1408
        %v1411 = vadd.f32 %v1376, %v1409
        %v1412 = vadd.f32 %v1377, %v1410
        %v1413 = vmul.f32 %v1411, 1.442695
        %v1414 = vpow.pop %v1413
        %v1415 = vmul.f32 %v1412, 1.442695
        %v1416 = vpow.pop %v1415
        %v1417 = vld [vmem:[#allocation2] sm:$0xff]
        %v1418 = vld [vmem:[#allocation2 + $0x8] sm:$0xff]
        %1419 = vmax.xlane.f32.xlu0 %v1414
        %v1420 = vpop.xlane.xlu0 %1419
        %1421 = vmax.xlane.f32.xlu0 %v1416
        %v1422 = vpop.xlane.xlu0 %1421
        %v1423 = vmax.f32 %v1417, %v1420
        %v1424 = vmax.f32 %v1418, %v1422
        %v1425 = vsub.f32 %v1417, %v1423
        %v1426 = vsub.f32 %v1418, %v1424
        %v1427 = vmul.f32 %v1425, 1.442695
        %v1428 = vpow.pop %v1427
        %v1429 = vmul.f32 %v1426, 1.442695
        %v1430 = vpow.pop %v1429
        %1432 = vset.pattern.permute.xlu0 0
        %1433 = vperm.xlu0 %1432, %v1423
        %v1434 = vpop.permute.xlu0 %1433
        %1437 = vset.pattern.permute.xlu0 0
        %1438 = vperm.xlu0 %1437, %v1424
        %v1439 = vpop.permute.xlu0 %1438
        %v1441 = vsub.f32 %v1414, %v1434
        %v1442 = vsub.f32 %v1416, %v1439
        %v1443 = vmul.f32 %v1441, 1.442695
        %v1444 = vpow.pop %v1443
        %v1445 = vmul.f32 %v1442, 1.442695
        %v1446 = vpow.pop %v1445
        %v1447 = vld [vmem:[#allocation3] sm:$0xff]
        %v1448 = vld [vmem:[#allocation3 + $0x8] sm:$0xff]
        %v1449 = vmul.f32 %v1428, %v1447
        %v1450 = vmul.f32 %v1430, %v1448
        %1451 = vadd.xlane.f32.xlu0 %v1444
        %v1452 = vpop.xlane.xlu0 %1451
        %1453 = vadd.xlane.f32.xlu0 %v1446
        %v1454 = vpop.xlane.xlu0 %1453
        %v1455 = vadd.f32 %v1449, %v1452
        %v1456 = vadd.f32 %v1450, %v1454
        %1457 = vst.msk [vmem:[#allocation3] sm:$0xff] %vm1404, %v1455
        %1458 = vst.msk [vmem:[#allocation3 + $0x8] sm:$0xff] %vm1404, %v1456
        %v1459 = vld [vmem:[#allocation4] sm:$0xff]
        %v1460 = vld [vmem:[#allocation4 + $0x8] sm:$0xff]
        %1462 = vset.pattern.permute.xlu0 0
        %1463 = vperm.xlu0 %1462, %v1428
        %v1464 = vpop.permute.xlu0 %1463
        %1467 = vset.pattern.permute.xlu0 0
        %1468 = vperm.xlu0 %1467, %v1430
        %v1469 = vpop.permute.xlu0 %1468
        %v1471 = vmul.f32 %v1464, %v1459
        %v1472 = vmul.f32 %v1469, %v1460
        %v1473 = vpack.c.bf16 %v1446, %v1444
        %v1474 = vld [vmem:[%s527] sm:$0xf]
        %v1475 = vld [vmem:[%s527 + $0x4] sm:$0xf]
        %v1476 = vld [vmem:[%s527 + $0x8] sm:$0xf]
        %v1477 = vld [vmem:[%s527 + $0xc] sm:$0xf]
        %v1478 = vld [vmem:[%s527 + $0x10] sm:$0xf]
        %v1479 = vld [vmem:[%s527 + $0x14] sm:$0xf]
        %v1480 = vld [vmem:[%s527 + $0x18] sm:$0xf]
        %v1481 = vld [vmem:[%s527 + $0x1c] sm:$0xf]
        %v1482 = vld [vmem:[%s527 + $0x20] sm:$0xf]
        %v1483 = vld [vmem:[%s527 + $0x24] sm:$0xf]
        %v1484 = vld [vmem:[%s527 + $0x28] sm:$0xf]
        %v1485 = vld [vmem:[%s527 + $0x2c] sm:$0xf]
        %v1486 = vld [vmem:[%s527 + $0x30] sm:$0xf]
        %v1487 = vld [vmem:[%s527 + $0x34] sm:$0xf]
        %v1488 = vld [vmem:[%s527 + $0x38] sm:$0xf]
        %v1489 = vld [vmem:[%s527 + $0x3c] sm:$0xf]
        %v1506 = vunpack.c.l.b16 %v1474
        %v1507 = vunpack.c.l.b16 %v1475
        %v1508 = vunpack.c.l.b16 %v1476
        %v1509 = vunpack.c.l.b16 %v1477
        %v1510 = vunpack.c.l.b16 %v1478
        %v1511 = vunpack.c.l.b16 %v1479
        %v1512 = vunpack.c.l.b16 %v1480
        %v1513 = vunpack.c.l.b16 %v1481
        %v1514 = vunpack.c.l.b16 %v1482
        %v1515 = vunpack.c.l.b16 %v1483
        %v1516 = vunpack.c.l.b16 %v1484
        %v1517 = vunpack.c.l.b16 %v1485
        %v1518 = vunpack.c.l.b16 %v1486
        %v1519 = vunpack.c.l.b16 %v1487
        %v1520 = vunpack.c.l.b16 %v1488
        %v1521 = vunpack.c.l.b16 %v1489
        %v1522 = vpack.c.b16 %v1507, %v1506
        %v1523 = vpack.c.b16 %v1509, %v1508
        %v1524 = vpack.c.b16 %v1511, %v1510
        %v1525 = vpack.c.b16 %v1513, %v1512
        %v1526 = vpack.c.b16 %v1515, %v1514
        %v1527 = vpack.c.b16 %v1517, %v1516
        %v1528 = vpack.c.b16 %v1519, %v1518
        %v1529 = vpack.c.b16 %v1521, %v1520
        %1538 = vmatpush.bf16.msra.mxu0 %v1529
        %1539 = vmatpush.bf16.msra.mxu0 %v1528
        %1540 = vmatpush.bf16.msra.mxu0 %v1527
        %1541 = vmatpush.bf16.msra.mxu0 %v1526
        %1542 = vmatpush.bf16.msra.mxu0 %v1525
        %1543 = vmatpush.bf16.msra.mxu0 %v1524
        %1544 = vmatpush.bf16.msra.mxu0 %v1523
        %1545 = vmatpush.bf16.msra.mxu0 %v1522
        %1546 = vmatmul.bf16.gmra.mxu0 %v1473
        %v1547 = vpop.f32.mrf.mxu0
        %v1548 = vadd.f32 0.0, %v1547
        %v1549 = vpop.f32.mrf.mxu0
        %v1550 = vadd.f32 0.0, %v1549
        %1551 = vdwg.mxu0
        %v1552 = vadd.f32 %v1471, %v1548
        %v1553 = vadd.f32 %v1472, %v1550
        %vm1554 = vcmask 261120
        %1555 = vst.msk [vmem:[#allocation4] sm:$0xff] %vm1554, %v1552
        %1556 = vst.msk [vmem:[#allocation4 + $0x8] sm:$0xff] %vm1554, %v1553
        %1557 = vst.msk [vmem:[#allocation2] sm:$0xff] %vm1404, %v1423
        %1558 = vst.msk [vmem:[#allocation2 + $0x8] sm:$0xff] %vm1404, %v1424
        %p1559 = scmp.eq.s32.totalorder %s32, 1
        // Predicated region
        $region137: #{tpu_custom_call.1} parent=115 // pred_check
          %p1560 = pneg %p1559
        $region138: #{tpu_custom_call.1} parent=115 // pred_check_branch
          %1562 = sbr.rel (%p1560) target = $region140
        $region139: #{tpu_custom_call.1} parent=115 // pred_region
          %v1563 = vld [vmem:[%s5] sm:$0x1]
          %v1564 = vld [vmem:[%s5 + $0x1] sm:$0x1]
          %v1565 = vld [vmem:[#allocation4] sm:$0xff]
          %v1566 = vld [vmem:[#allocation4 + $0x8] sm:$0xff]
          %v1567 = vld [vmem:[#allocation3] sm:$0xff]
          %v1568 = vld [vmem:[#allocation3 + $0x8] sm:$0xff]
          %v1569 = vrcp.pop %v1567
          %v1570 = vrcp.pop %v1568
          %1572 = vset.pattern.permute.xlu0 0
          %1573 = vperm.xlu0 %1572, %v1569
          %v1574 = vpop.permute.xlu0 %1573
          %1577 = vset.pattern.permute.xlu0 0
          %1578 = vperm.xlu0 %1577, %v1570
          %v1579 = vpop.permute.xlu0 %1578
          %v1581 = vmul.f32 %v1565, %v1574
          %v1582 = vmul.f32 %v1566, %v1579
          %v1583 = vsel %vm1554, %v1581, 0.0
          %1584 = vadd.xlane.f32.xlu0 %v1583
          %v1585 = vpop.xlane.xlu0 %1584
          %v1586 = vsel %vm1554, %v1582, 0.0
          %1587 = vadd.xlane.f32.xlu0 %v1586
          %v1588 = vpop.xlane.xlu0 %1587
          %v1589 = vrcp.pop 32.0
          %v1590 = vmul.f32 32.0, %v1589
          %v1591 = vsub.f32 1.0, %v1590
          %v1592 = vmul.f32 %v1589, %v1591
          %v1593 = vadd.f32 %v1589, %v1592
          %vm1594 = vweird.f32 %v1589
          %v1595 = vsel %vm1594, %v1589, %v1593
          %v1596 = vmul.f32 %v1585, %v1595
          %v1597 = vmul.f32 %v1588, %v1595
          %v1598 = vsub.f32 %v1581, %v1596
          %v1599 = vsub.f32 %v1582, %v1597
          %v1600 = vmul.f32 %v1598, %v1598
          %v1601 = vmul.f32 %v1599, %v1599
          %v1602 = vsel %vm1554, %v1600, 0.0
          %1603 = vadd.xlane.f32.xlu0 %v1602
          %v1604 = vpop.xlane.xlu0 %1603
          %v1605 = vsel %vm1554, %v1601, 0.0
          %1606 = vadd.xlane.f32.xlu0 %v1605
          %v1607 = vpop.xlane.xlu0 %1606
          %v1608 = vmul.f32 %v1604, %v1595
          %v1609 = vmul.f32 %v1607, %v1595
          %v1610 = vadd.f32 %v1608, 1e-05
          %v1611 = vadd.f32 %v1609, 1e-05
          %v1612 = vrsqrt.pop %v1610
          %v1613 = vmul.f32 %v1612, %v1610
          %v1614 = vmul.f32 %v1613, %v1612
          %v1615 = vmul.f32 0.5, %v1614
          %v1616 = vsub.f32 1.5, %v1615
          %v1617 = vmul.f32 %v1612, %v1616
          %vm1618 = vweird.f32 %v1610
          %vm1619 = vweird.f32 %v1612
          %vm1620 = vmor %vm1618, %vm1619
          %v1621 = vsel %vm1620, %v1612, %v1617
          %v1622 = vrsqrt.pop %v1611
          %v1623 = vmul.f32 %v1622, %v1611
          %v1624 = vmul.f32 %v1623, %v1622
          %v1625 = vmul.f32 0.5, %v1624
          %v1626 = vsub.f32 1.5, %v1625
          %v1627 = vmul.f32 %v1622, %v1626
          %vm1628 = vweird.f32 %v1611
          %vm1629 = vweird.f32 %v1622
          %vm1630 = vmor %vm1628, %vm1629
          %v1631 = vsel %vm1630, %v1622, %v1627
          %v1632 = vmul.f32 %v1598, %v1621
          %v1633 = vmul.f32 %v1599, %v1631
          %v1634 = vperm.slane %v1563, 0
          %v1635 = vmul.f32 %v1632, %v1634
          %v1636 = vmul.f32 %v1633, %v1634
          %v1637 = vperm.slane %v1564, 0
          %v1638 = vadd.f32 %v1635, %v1637
          %v1639 = vadd.f32 %v1636, %v1637
          %1640 = vst.msk [vmem:[%s508] sm:$0xff] %vm1554, %v1638
          %1641 = vst.msk [vmem:[%s508 + $0x8] sm:$0xff] %vm1554, %v1639
          %v1642 = vld [vmem:[#allocation5] sm:$0xff]
          %v1643 = vld [vmem:[#allocation5 + $0x8] sm:$0xff]
          %1644 = vst.msk [vmem:[%s534] sm:$0xff] %vm1404, %v1642
          %1645 = vst.msk [vmem:[%s534 + $0x8] sm:$0xff] %vm1404, %v1643
        $region140: #{tpu_custom_call.1} parent=115 // pred_fallthru
          _
        %s1646 = sand.u32 %s221, 1
        %s1647 = scalar_lea.sflag [#allocation9], %s1646
        %s1648 = sand.u32 %s221, 1
        %s1649 = smul.addr %s1648, 16
        %s1650 = scalar_lea.vmem [#allocation13], %s1649
        %s1651 = smul.u32 2, %s31
        %p1652 = scmp.lt.s32.totalorder %s1651, 3
        %s1653 = scalar_select %p1652, %s1651, 3
        %s1654 = smul.addr %s1653, 8
        %s1655 = scalar_lea.vmem %s8, %s1654
        // Predicated region
        $region141: #{tpu_custom_call.1} parent=115 // pred_check
          %p1656 = pneg %p231
        $region142: #{tpu_custom_call.1} parent=115 // pred_check_branch
          %1658 = sbr.rel (%p1656) target = $region144
        $region143: #{tpu_custom_call.1} parent=115 // pred_region
          %s1659 = smul.u32 2, %s31
          %1661 = vsyncadd %s1647, 0
          %s1662 = smul.addr %s1659, 8
          %s1663 = scalar_lea.hbm %s7, %s1662
          %s1664 = sshll.u32 %s1650, 4
          %s1665 = int_to_ptr.vmem [resolvable:$true] %s1664
          %s1666 = sshll.u32 %s1663, 4
          %s1667 = int_to_ptr.hbm [resolvable:$true] %s1666
          %1672 = dma.vmem_to_hbm [thread:$0]  %s1665, 256, %s1667, %s1647, 128, 128, 8
        $region144: #{tpu_custom_call.1} parent=115 // pred_fallthru
          _
        // Predicated region
        $region145: #{tpu_custom_call.1} parent=115 // pred_check
          %p1673 = pneg %p257
        $region146: #{tpu_custom_call.1} parent=115 // pred_check_branch
          %1675 = sbr.rel (%p1673) target = $region148
        $region147: #{tpu_custom_call.1} parent=115 // pred_region
          %s1676 = smul.u32 2, %s31
        $region148: #{tpu_custom_call.1} parent=115 // pred_fallthru
          _
      $region116: #{tpu_custom_call.1} parent=5 // pred_fallthru
        _
      %p1677 = scmp.le.s32.totalorder 2, %s22
      // Predicated region
      $region149: #{tpu_custom_call.1} parent=5 // pred_check
        %p1678 = pneg %p1677
      $region150: #{tpu_custom_call.1} parent=5 // pred_check_branch
        %1680 = sbr.rel (%p1678) target = $region152
      $region151: #{tpu_custom_call.1} parent=5 // pred_region
        %s1681 = ssub.s32 %s22, 2
        // Predicated region
        $region153: #{tpu_custom_call.1} parent=151 // pred_check
          %p1682 = pneg %p237
        $region154: #{tpu_custom_call.1} parent=151 // pred_check_branch
          %1684 = sbr.rel (%p1682) target = $region156
        $region155: #{tpu_custom_call.1} parent=151 // pred_region
          %s1685 = sand.u32 %s222, 1
          %s1686 = scalar_lea.sflag [#allocation9], %s1685
          %s1687 = sand.u32 %s222, 1
          %s1688 = smul.addr %s1687, 16
          %s1689 = scalar_lea.vmem [#allocation13], %s1688
          %1691 = dma.done %s1686, 256
        $region156: #{tpu_custom_call.1} parent=151 // pred_fallthru
          _
        // Predicated region
        $region157: #{tpu_custom_call.1} parent=151 // pred_check
          %p1692 = pneg %p263
        $region158: #{tpu_custom_call.1} parent=151 // pred_check_branch
          %1694 = sbr.rel (%p1692) target = $region160
        $region159: #{tpu_custom_call.1} parent=151 // pred_region
          %s1695 = smul.u32 2, %s33
          %p1696 = scmp.lt.s32.totalorder %s1695, 3
          %s1697 = scalar_select %p1696, %s1695, 3
          %s1698 = smul.addr %s1697, 8
          %s1699 = scalar_lea.vmem %s8, %s1698
        $region160: #{tpu_custom_call.1} parent=151 // pred_fallthru
          _
      $region152: #{tpu_custom_call.1} parent=5 // pred_fallthru
        _
    $region6: #{tpu_custom_call.1} parent=1 // loop_footer
      %s26 = sadd.s32 1, %s22
    $region7: #{tpu_custom_call.1} parent=1 // loop_footer_branch
      %21 = sbr.rel target = $region3
    $region8: #{tpu_custom_call.1} parent=1 // loop_exit
      _
    %1700 = vsyncpa [#allocation8], 1
    %s1701 = scalar_lea.sflag [#allocation8], 1
    %1702 = vsyncpa %s1701, 1
    %1703 = vsyncpa [#allocation9], 1
    %s1704 = scalar_lea.sflag [#allocation9], 1
    %1705 = vsyncpa %s1704, 1
    %1706 = vsyncpa [#allocation10], 1
    %s1707 = scalar_lea.sflag [#allocation10], 1
    %1708 = vsyncpa %s1707, 1

</llo_original>
